<compile_context>
chip_gen: v7x
topology: tpu7x:2x2x1
jax: 0.10.0
libtpu: 0.0.40
codegen_flags: <defaults>
</compile_context>

<pallas_src>
from functools import partial

import jax
import jax.numpy as jnp
from jax.experimental import pallas as pl
from jax.experimental.pallas import tpu as pltpu


def closest_factors(n):
    factor = int(n ** 0.5)
    while n % factor != 0:
        factor -= 1
    return (max(factor, n // factor), min(factor, n // factor))


def _pick_batch_tile(B, Mp, C):
    """Largest divisor of B whose packed lane width keeps per-step VMEM modest."""
    bytes_per_lane = 4 * (9 + 3 * C + 8)   # patches + y1 + acc/y2 + out (+ slack)
    budget = 16 * 1024 * 1024
    best = 1
    for bb in range(1, B + 1):
        if B % bb == 0 and bb * Mp * bytes_per_lane <= budget:
            best = bb
    return best


def _subsample_kernel(patches_ref, w1_ref, w2_ref, wl_ref, bias_ref, out_ref,
                      *, T1, T2, F2, M1, Mp, BB):
    patches = patches_ref[...]          # (9, BB*Mp)  lane-dense im2col, batch-packed
    biases = bias_ref[...]              # (C, 3)      [b1 | b2 | bL] as columns
    b1 = biases[:, 0:1]                 # (C, 1)
    b2 = biases[:, 1:2]
    bl = biases[:, 2:3]

    # ---- conv1 + ReLU: one MXU matmul over every (b, t1, f1) position --------
    y1 = jnp.dot(w1_ref[...], patches, preferred_element_type=jnp.float32) + b1
    y1 = jnp.maximum(y1, 0.0)           # (C, BB*Mp), channels-first

    # ---- conv2 (3x3, stride 1) + ReLU: 9 accumulated wide matmuls ------------
    # Row layout per batch is feature-major: r = f*T1 + t, so tap (di, dj) reads
    # the contiguous lane slice shifted by dj*T1 + di.  For valid output rows
    # (t2 < T2, f2 < F2) the shifted read never leaves that batch's Mp block.
    Lacc = (BB - 1) * Mp + M1
    w2 = w2_ref[...]                    # (9, Cout, Cin)
    acc = jnp.dot(w2[0], y1[:, 0:Lacc], preferred_element_type=jnp.float32)
    for k in range(1, 9):
        off = (k % 3) * T1 + (k // 3)   # k = di*3 + dj  ->  dj*T1 + di
        acc = acc + jnp.dot(w2[k], y1[:, off:off + Lacc],
                            preferred_element_type=jnp.float32)
    y2 = jnp.maximum(acc + b2, 0.0)     # (C, Lacc); t2>=T2 / f2>=F2 rows unused

    # ---- Linear over the flattened (c, f) features: F2 accumulated matmuls ---
    Lout = (BB - 1) * Mp + T2
    wl = wl_ref[...]                    # (F2, Cout, Cin)
    out = jnp.dot(wl[0], y2[:, 0:Lout], preferred_element_type=jnp.float32)
    for f in range(1, F2):
        out = out + jnp.dot(wl[f], y2[:, f * T1:f * T1 + Lout],
                            preferred_element_type=jnp.float32)
    out = out + bl                      # (Cout, Lout)

    # Dropout(p=0.0) == identity.  One (T2, C) slab store per packed batch.
    for bb in range(BB):
        out_ref[bb, :, :] = out[:, bb * Mp:bb * Mp + T2].T.astype(out_ref.dtype)


def conv2d_subsampling(x, params, time_stride=2, feature_stride=2):
    W1, b1, W2, b2, WL, bL = params
    B, T, D = x.shape
    C = W1.shape[0]

    ts1, ts2 = closest_factors(time_stride)
    fs1, fs2 = closest_factors(feature_stride)
    # TODO(synk): composite stride factors (second conv stride > 1) are not
    # handled in-kernel; the default stride=2 -> (2, 1) is fully supported.
    assert ts2 == 1 and fs2 == 1, "kernel assumes second conv stride == 1"

    T1 = (T - 3) // ts1 + 1
    F1 = (D - 3) // fs1 + 1
    T2 = T1 - 2
    F2 = F1 - 2

    M1 = F1 * T1                        # valid conv1 positions (feature-major)
    Mneed = M1 + 2 * T1 + 2             # + halo read by conv2's shifted slices
    Mp = ((Mneed + 127) // 128) * 128   # lane-aligned per-batch stride

    BB = _pick_batch_tile(B, Mp, C)     # batches packed per grid step

    # ---- im2col for conv1: tap-major (sublane) x packed position (lane) ------
    # TODO(synk): for very long sequences build the 9 taps in-kernel from raw x
    # (and add a time-tile grid axis) to remove the remaining ~2.25x HBM
    # inflation and to bound per-block VMEM on v7x (64 MiB).
    xf = x.astype(jnp.float32)
    taps = []
    for ki in range(3):
        for kj in range(3):
            sl = xf[:, ki:ki + ts1 * T1:ts1, kj:kj + fs1 * F1:fs1]   # (B,T1,F1)
            taps.append(jnp.transpose(sl, (0, 2, 1)).reshape(B, M1))  # f-major
    patches = jnp.stack(taps, axis=1)                                 # (B,9,M1)
    patches = jnp.pad(patches, ((0, 0), (0, 0), (0, Mp - M1)))        # (B,9,Mp)
    patches = jnp.transpose(patches, (1, 0, 2)).reshape(9, B * Mp)    # (9,B*Mp)

    # ---- parameter re-layout (channels-first matmul forms) -------------------
    w1_m = W1.reshape(C, 9).astype(jnp.float32)                       # (C, 9)
    w2_m = jnp.transpose(W2, (2, 3, 0, 1)).reshape(9, C, C)           # (tap,Co,Ci)
    wl_m = jnp.transpose(WL.reshape(C, C, F2), (2, 0, 1))             # (F2,Co,Ci)
    biases = jnp.stack([b1, b2, bL], axis=1).astype(jnp.float32)      # (C, 3)

    kernel = partial(_subsample_kernel, T1=T1, T2=T2, F2=F2,
                     M1=M1, Mp=Mp, BB=BB)

    out = pl.pallas_call(
        kernel,
        out_shape=jax.ShapeDtypeStruct((B, T2, C), jnp.float32),
        grid_spec=pltpu.PrefetchScalarGridSpec(
            num_scalar_prefetch=0,
            grid=(B // BB,),
            in_specs=[
                pl.BlockSpec((9, BB * Mp), lambda i: (0, i)),     # patches
                pl.BlockSpec((C, 9), lambda i: (0, 0)),           # w1
                pl.BlockSpec((9, C, C), lambda i: (0, 0, 0)),     # w2
                pl.BlockSpec((F2, C, C), lambda i: (0, 0, 0)),    # wl
                pl.BlockSpec((C, 3), lambda i: (0, 0)),           # biases
            ],
            out_specs=pl.BlockSpec((BB, T2, C), lambda i: (i, 0, 0)),
        ),
        compiler_params=pltpu.CompilerParams(
            dimension_semantics=("parallel",),
        ),
    )(patches, w1_m, w2_m, wl_m, biases)
    return out


def reference(x, params, time_stride=2, feature_stride=2):
    """Pure-JAX reference mirroring the PyTorch module (NCHW)."""
    W1, b1, W2, b2, WL, bL = params
    ts1, ts2 = closest_factors(time_stride)
    fs1, fs2 = closest_factors(feature_stride)
    dn = ("NCHW", "OIHW", "NCHW")
    y = x[:, None, :, :]
    y = jax.lax.conv_general_dilated(y, W1, (ts1, fs1), "VALID",
                                     dimension_numbers=dn)
    y = jax.nn.relu(y + b1[None, :, None, None])
    y = jax.lax.conv_general_dilated(y, W2, (ts2, fs2), "VALID",
                                     dimension_numbers=dn)
    y = jax.nn.relu(y + b2[None, :, None, None])
    B, Cc, Tt, Ff = y.shape
    y = jnp.transpose(y, (0, 2, 1, 3)).reshape(B, Tt, Cc * Ff)
    return y @ WL.T + bL


if __name__ == "__main__":
    B, T, D, C = 2, 16, 16, 8          # batch, seq_len, input_dim, output_dim
    T1 = (T - 3) // 2 + 1
    F1 = (D - 3) // 2 + 1
    T2, F2 = T1 - 2, F1 - 2
    conv_out_dim = C * F2

    key = jax.random.PRNGKey(0)
    ks = jax.random.split(key, 7)
    x  = jax.random.normal(ks[0], (B, T, D), jnp.float32)
    W1 = 0.1 * jax.random.normal(ks[1], (C, 1, 3, 3), jnp.float32)
    b1 = 0.1 * jax.random.normal(ks[2], (C,), jnp.float32)
    W2 = 0.1 * jax.random.normal(ks[3], (C, C, 3, 3), jnp.float32)
    b2 = 0.1 * jax.random.normal(ks[4], (C,), jnp.float32)
    WL = 0.1 * jax.random.normal(ks[5], (C, conv_out_dim), jnp.float32)
    bL = 0.1 * jax.random.normal(ks[6], (C,), jnp.float32)
    params = (W1, b1, W2, b2, WL, bL)

    out = jax.block_until_ready(conv2d_subsampling(x, params))
    ref = reference(x, params)

    assert out.shape == (B, T2, C), (out.shape, (B, T2, C))
    assert jnp.allclose(out, ref, atol=1e-4, rtol=1e-4), float(
        jnp.max(jnp.abs(out - ref)))
    print("KERNEL_OK")
</pallas_src>

<mosaic_0001>
module attributes {stable_mosaic.version = 11 : i64} {
  func.func @_subsample_kernel(%arg0: i32, %arg1: memref<9x256xf32, #tpu.memory_space<vmem>>, %arg2: memref<8x9xf32, #tpu.memory_space<vmem>>, %arg3: memref<9x8x8xf32, #tpu.memory_space<vmem>>, %arg4: memref<5x8x8xf32, #tpu.memory_space<vmem>>, %arg5: memref<8x3xf32, #tpu.memory_space<vmem>>, %arg6: memref<2x5x8xf32, #tpu.memory_space<vmem>>) attributes {dimension_semantics = [#tpu.dimension_semantics<parallel>], iteration_bounds = array<i64: 1>, scalar_prefetch = 0 : i64, scratch_operands = 0 : i64, tpu.core_type = #tpu.core_type<tc>, window_params = [{transform_indices = @transform_0, window_bounds = array<i64: 9, 256>}, {pipeline_mode = #tpu.pipeline_mode<synchronous>, transform_indices = @transform_1, window_bounds = array<i64: 8, 9>}, {pipeline_mode = #tpu.pipeline_mode<synchronous>, transform_indices = @transform_2, window_bounds = array<i64: 9, 8, 8>}, {pipeline_mode = #tpu.pipeline_mode<synchronous>, transform_indices = @transform_3, window_bounds = array<i64: 5, 8, 8>}, {pipeline_mode = #tpu.pipeline_mode<synchronous>, transform_indices = @transform_4, window_bounds = array<i64: 8, 3>}, {transform_indices = @transform_5, window_bounds = array<i64: 2, 5, 8>}]} {
    %c0 = arith.constant 0 : index
    %c0_0 = arith.constant 0 : index
    %0 = vector.load %arg1[%c0, %c0_0] : memref<9x256xf32, #tpu.memory_space<vmem>>, vector<9x256xf32>
    %c0_1 = arith.constant 0 : index
    %c0_2 = arith.constant 0 : index
    %1 = vector.load %arg5[%c0_1, %c0_2] : memref<8x3xf32, #tpu.memory_space<vmem>>, vector<8x3xf32>
    %2 = vector.extract_strided_slice %1 {offsets = [0, 0], sizes = [8, 1], strides = [1, 1]} : vector<8x3xf32> to vector<8x1xf32>
    %3 = vector.extract_strided_slice %1 {offsets = [0, 1], sizes = [8, 1], strides = [1, 1]} : vector<8x3xf32> to vector<8x1xf32>
    %4 = vector.extract_strided_slice %1 {offsets = [0, 2], sizes = [8, 1], strides = [1, 1]} : vector<8x3xf32> to vector<8x1xf32>
    %c0_3 = arith.constant 0 : index
    %c0_4 = arith.constant 0 : index
    %5 = vector.load %arg2[%c0_3, %c0_4] : memref<8x9xf32, #tpu.memory_space<vmem>>, vector<8x9xf32>
    %cst = arith.constant dense<0.000000e+00> : vector<8x256xf32>
    %6 = tpu.matmul %5, %0, %cst {dimension_numbers = #tpu.dot_dimension_numbers<[1], [0], [0], [1], [0, 0, 1, 1], [], []>} : vector<8x9xf32>, vector<9x256xf32>, vector<8x256xf32> -> vector<8x256xf32>
    %7 = vector.broadcast %2 : vector<8x1xf32> to vector<8x256xf32>
    %8 = arith.addf %6, %7 : vector<8x256xf32>
    %cst_5 = arith.constant 0.000000e+00 : f32
    %9 = vector.broadcast %cst_5 : f32 to vector<8x256xf32>
    %10 = arith.maximumf %8, %9 : vector<8x256xf32>
    %c0_6 = arith.constant 0 : index
    %c0_7 = arith.constant 0 : index
    %c0_8 = arith.constant 0 : index
    %11 = vector.load %arg3[%c0_6, %c0_7, %c0_8] : memref<9x8x8xf32, #tpu.memory_space<vmem>>, vector<9x8x8xf32>
    %12 = vector.extract_strided_slice %11 {offsets = [0, 0, 0], sizes = [1, 8, 8], strides = [1, 1, 1]} : vector<9x8x8xf32> to vector<1x8x8xf32>
    %13 = vector.shape_cast %12 : vector<1x8x8xf32> to vector<8x8xf32>
    %14 = vector.extract_strided_slice %10 {offsets = [0, 0], sizes = [8, 177], strides = [1, 1]} : vector<8x256xf32> to vector<8x177xf32>
    %cst_9 = arith.constant dense<0.000000e+00> : vector<8x177xf32>
    %15 = tpu.matmul %13, %14, %cst_9 {dimension_numbers = #tpu.dot_dimension_numbers<[1], [0], [0], [1], [0, 0, 1, 1], [], []>} : vector<8x8xf32>, vector<8x177xf32>, vector<8x177xf32> -> vector<8x177xf32>
    %16 = vector.extract_strided_slice %11 {offsets = [1, 0, 0], sizes = [1, 8, 8], strides = [1, 1, 1]} : vector<9x8x8xf32> to vector<1x8x8xf32>
    %17 = vector.shape_cast %16 : vector<1x8x8xf32> to vector<8x8xf32>
    %18 = vector.extract_strided_slice %10 {offsets = [0, 7], sizes = [8, 177], strides = [1, 1]} : vector<8x256xf32> to vector<8x177xf32>
    %cst_10 = arith.constant dense<0.000000e+00> : vector<8x177xf32>
    %19 = tpu.matmul %17, %18, %cst_10 {dimension_numbers = #tpu.dot_dimension_numbers<[1], [0], [0], [1], [0, 0, 1, 1], [], []>} : vector<8x8xf32>, vector<8x177xf32>, vector<8x177xf32> -> vector<8x177xf32>
    %20 = arith.addf %15, %19 : vector<8x177xf32>
    %21 = vector.extract_strided_slice %11 {offsets = [2, 0, 0], sizes = [1, 8, 8], strides = [1, 1, 1]} : vector<9x8x8xf32> to vector<1x8x8xf32>
    %22 = vector.shape_cast %21 : vector<1x8x8xf32> to vector<8x8xf32>
    %23 = vector.extract_strided_slice %10 {offsets = [0, 14], sizes = [8, 177], strides = [1, 1]} : vector<8x256xf32> to vector<8x177xf32>
    %cst_11 = arith.constant dense<0.000000e+00> : vector<8x177xf32>
    %24 = tpu.matmul %22, %23, %cst_11 {dimension_numbers = #tpu.dot_dimension_numbers<[1], [0], [0], [1], [0, 0, 1, 1], [], []>} : vector<8x8xf32>, vector<8x177xf32>, vector<8x177xf32> -> vector<8x177xf32>
    %25 = arith.addf %20, %24 : vector<8x177xf32>
    %26 = vector.extract_strided_slice %11 {offsets = [3, 0, 0], sizes = [1, 8, 8], strides = [1, 1, 1]} : vector<9x8x8xf32> to vector<1x8x8xf32>
    %27 = vector.shape_cast %26 : vector<1x8x8xf32> to vector<8x8xf32>
    %28 = vector.extract_strided_slice %10 {offsets = [0, 1], sizes = [8, 177], strides = [1, 1]} : vector<8x256xf32> to vector<8x177xf32>
    %cst_12 = arith.constant dense<0.000000e+00> : vector<8x177xf32>
    %29 = tpu.matmul %27, %28, %cst_12 {dimension_numbers = #tpu.dot_dimension_numbers<[1], [0], [0], [1], [0, 0, 1, 1], [], []>} : vector<8x8xf32>, vector<8x177xf32>, vector<8x177xf32> -> vector<8x177xf32>
    %30 = arith.addf %25, %29 : vector<8x177xf32>
    %31 = vector.extract_strided_slice %11 {offsets = [4, 0, 0], sizes = [1, 8, 8], strides = [1, 1, 1]} : vector<9x8x8xf32> to vector<1x8x8xf32>
    %32 = vector.shape_cast %31 : vector<1x8x8xf32> to vector<8x8xf32>
    %33 = vector.extract_strided_slice %10 {offsets = [0, 8], sizes = [8, 177], strides = [1, 1]} : vector<8x256xf32> to vector<8x177xf32>
    %cst_13 = arith.constant dense<0.000000e+00> : vector<8x177xf32>
    %34 = tpu.matmul %32, %33, %cst_13 {dimension_numbers = #tpu.dot_dimension_numbers<[1], [0], [0], [1], [0, 0, 1, 1], [], []>} : vector<8x8xf32>, vector<8x177xf32>, vector<8x177xf32> -> vector<8x177xf32>
    %35 = arith.addf %30, %34 : vector<8x177xf32>
    %36 = vector.extract_strided_slice %11 {offsets = [5, 0, 0], sizes = [1, 8, 8], strides = [1, 1, 1]} : vector<9x8x8xf32> to vector<1x8x8xf32>
    %37 = vector.shape_cast %36 : vector<1x8x8xf32> to vector<8x8xf32>
    %38 = vector.extract_strided_slice %10 {offsets = [0, 15], sizes = [8, 177], strides = [1, 1]} : vector<8x256xf32> to vector<8x177xf32>
    %cst_14 = arith.constant dense<0.000000e+00> : vector<8x177xf32>
    %39 = tpu.matmul %37, %38, %cst_14 {dimension_numbers = #tpu.dot_dimension_numbers<[1], [0], [0], [1], [0, 0, 1, 1], [], []>} : vector<8x8xf32>, vector<8x177xf32>, vector<8x177xf32> -> vector<8x177xf32>
    %40 = arith.addf %35, %39 : vector<8x177xf32>
    %41 = vector.extract_strided_slice %11 {offsets = [6, 0, 0], sizes = [1, 8, 8], strides = [1, 1, 1]} : vector<9x8x8xf32> to vector<1x8x8xf32>
    %42 = vector.shape_cast %41 : vector<1x8x8xf32> to vector<8x8xf32>
    %43 = vector.extract_strided_slice %10 {offsets = [0, 2], sizes = [8, 177], strides = [1, 1]} : vector<8x256xf32> to vector<8x177xf32>
    %cst_15 = arith.constant dense<0.000000e+00> : vector<8x177xf32>
    %44 = tpu.matmul %42, %43, %cst_15 {dimension_numbers = #tpu.dot_dimension_numbers<[1], [0], [0], [1], [0, 0, 1, 1], [], []>} : vector<8x8xf32>, vector<8x177xf32>, vector<8x177xf32> -> vector<8x177xf32>
    %45 = arith.addf %40, %44 : vector<8x177xf32>
    %46 = vector.extract_strided_slice %11 {offsets = [7, 0, 0], sizes = [1, 8, 8], strides = [1, 1, 1]} : vector<9x8x8xf32> to vector<1x8x8xf32>
    %47 = vector.shape_cast %46 : vector<1x8x8xf32> to vector<8x8xf32>
    %48 = vector.extract_strided_slice %10 {offsets = [0, 9], sizes = [8, 177], strides = [1, 1]} : vector<8x256xf32> to vector<8x177xf32>
    %cst_16 = arith.constant dense<0.000000e+00> : vector<8x177xf32>
    %49 = tpu.matmul %47, %48, %cst_16 {dimension_numbers = #tpu.dot_dimension_numbers<[1], [0], [0], [1], [0, 0, 1, 1], [], []>} : vector<8x8xf32>, vector<8x177xf32>, vector<8x177xf32> -> vector<8x177xf32>
    %50 = arith.addf %45, %49 : vector<8x177xf32>
    %51 = vector.extract_strided_slice %11 {offsets = [8, 0, 0], sizes = [1, 8, 8], strides = [1, 1, 1]} : vector<9x8x8xf32> to vector<1x8x8xf32>
    %52 = vector.shape_cast %51 : vector<1x8x8xf32> to vector<8x8xf32>
    %53 = vector.extract_strided_slice %10 {offsets = [0, 16], sizes = [8, 177], strides = [1, 1]} : vector<8x256xf32> to vector<8x177xf32>
    %cst_17 = arith.constant dense<0.000000e+00> : vector<8x177xf32>
    %54 = tpu.matmul %52, %53, %cst_17 {dimension_numbers = #tpu.dot_dimension_numbers<[1], [0], [0], [1], [0, 0, 1, 1], [], []>} : vector<8x8xf32>, vector<8x177xf32>, vector<8x177xf32> -> vector<8x177xf32>
    %55 = arith.addf %50, %54 : vector<8x177xf32>
    %56 = vector.broadcast %3 : vector<8x1xf32> to vector<8x177xf32>
    %57 = arith.addf %55, %56 : vector<8x177xf32>
    %cst_18 = arith.constant 0.000000e+00 : f32
    %58 = vector.broadcast %cst_18 : f32 to vector<8x177xf32>
    %59 = arith.maximumf %57, %58 : vector<8x177xf32>
    %c0_19 = arith.constant 0 : index
    %c0_20 = arith.constant 0 : index
    %c0_21 = arith.constant 0 : index
    %60 = vector.load %arg4[%c0_19, %c0_20, %c0_21] : memref<5x8x8xf32, #tpu.memory_space<vmem>>, vector<5x8x8xf32>
    %61 = vector.extract_strided_slice %60 {offsets = [0, 0, 0], sizes = [1, 8, 8], strides = [1, 1, 1]} : vector<5x8x8xf32> to vector<1x8x8xf32>
    %62 = vector.shape_cast %61 : vector<1x8x8xf32> to vector<8x8xf32>
    %63 = vector.extract_strided_slice %59 {offsets = [0, 0], sizes = [8, 133], strides = [1, 1]} : vector<8x177xf32> to vector<8x133xf32>
    %cst_22 = arith.constant dense<0.000000e+00> : vector<8x133xf32>
    %64 = tpu.matmul %62, %63, %cst_22 {dimension_numbers = #tpu.dot_dimension_numbers<[1], [0], [0], [1], [0, 0, 1, 1], [], []>} : vector<8x8xf32>, vector<8x133xf32>, vector<8x133xf32> -> vector<8x133xf32>
    %65 = vector.extract_strided_slice %60 {offsets = [1, 0, 0], sizes = [1, 8, 8], strides = [1, 1, 1]} : vector<5x8x8xf32> to vector<1x8x8xf32>
    %66 = vector.shape_cast %65 : vector<1x8x8xf32> to vector<8x8xf32>
    %67 = vector.extract_strided_slice %59 {offsets = [0, 7], sizes = [8, 133], strides = [1, 1]} : vector<8x177xf32> to vector<8x133xf32>
    %cst_23 = arith.constant dense<0.000000e+00> : vector<8x133xf32>
    %68 = tpu.matmul %66, %67, %cst_23 {dimension_numbers = #tpu.dot_dimension_numbers<[1], [0], [0], [1], [0, 0, 1, 1], [], []>} : vector<8x8xf32>, vector<8x133xf32>, vector<8x133xf32> -> vector<8x133xf32>
    %69 = arith.addf %64, %68 : vector<8x133xf32>
    %70 = vector.extract_strided_slice %60 {offsets = [2, 0, 0], sizes = [1, 8, 8], strides = [1, 1, 1]} : vector<5x8x8xf32> to vector<1x8x8xf32>
    %71 = vector.shape_cast %70 : vector<1x8x8xf32> to vector<8x8xf32>
    %72 = vector.extract_strided_slice %59 {offsets = [0, 14], sizes = [8, 133], strides = [1, 1]} : vector<8x177xf32> to vector<8x133xf32>
    %cst_24 = arith.constant dense<0.000000e+00> : vector<8x133xf32>
    %73 = tpu.matmul %71, %72, %cst_24 {dimension_numbers = #tpu.dot_dimension_numbers<[1], [0], [0], [1], [0, 0, 1, 1], [], []>} : vector<8x8xf32>, vector<8x133xf32>, vector<8x133xf32> -> vector<8x133xf32>
    %74 = arith.addf %69, %73 : vector<8x133xf32>
    %75 = vector.extract_strided_slice %60 {offsets = [3, 0, 0], sizes = [1, 8, 8], strides = [1, 1, 1]} : vector<5x8x8xf32> to vector<1x8x8xf32>
    %76 = vector.shape_cast %75 : vector<1x8x8xf32> to vector<8x8xf32>
    %77 = vector.extract_strided_slice %59 {offsets = [0, 21], sizes = [8, 133], strides = [1, 1]} : vector<8x177xf32> to vector<8x133xf32>
    %cst_25 = arith.constant dense<0.000000e+00> : vector<8x133xf32>
    %78 = tpu.matmul %76, %77, %cst_25 {dimension_numbers = #tpu.dot_dimension_numbers<[1], [0], [0], [1], [0, 0, 1, 1], [], []>} : vector<8x8xf32>, vector<8x133xf32>, vector<8x133xf32> -> vector<8x133xf32>
    %79 = arith.addf %74, %78 : vector<8x133xf32>
    %80 = vector.extract_strided_slice %60 {offsets = [4, 0, 0], sizes = [1, 8, 8], strides = [1, 1, 1]} : vector<5x8x8xf32> to vector<1x8x8xf32>
    %81 = vector.shape_cast %80 : vector<1x8x8xf32> to vector<8x8xf32>
    %82 = vector.extract_strided_slice %59 {offsets = [0, 28], sizes = [8, 133], strides = [1, 1]} : vector<8x177xf32> to vector<8x133xf32>
    %cst_26 = arith.constant dense<0.000000e+00> : vector<8x133xf32>
    %83 = tpu.matmul %81, %82, %cst_26 {dimension_numbers = #tpu.dot_dimension_numbers<[1], [0], [0], [1], [0, 0, 1, 1], [], []>} : vector<8x8xf32>, vector<8x133xf32>, vector<8x133xf32> -> vector<8x133xf32>
    %84 = arith.addf %79, %83 : vector<8x133xf32>
    %85 = vector.broadcast %4 : vector<8x1xf32> to vector<8x133xf32>
    %86 = arith.addf %84, %85 : vector<8x133xf32>
    %87 = vector.extract_strided_slice %86 {offsets = [0, 0], sizes = [8, 5], strides = [1, 1]} : vector<8x133xf32> to vector<8x5xf32>
    %88 = tpu.transpose %87, [1, 0] : vector<8x5xf32> -> vector<5x8xf32>
    %c0_27 = arith.constant 0 : index
    %c0_28 = arith.constant 0 : index
    %c0_29 = arith.constant 0 : index
    %89 = vector.load %arg6[%c0_27, %c0_28, %c0_29] : memref<2x5x8xf32, #tpu.memory_space<vmem>>, vector<1x5x8xf32>
    %90 = vector.shape_cast %89 : vector<1x5x8xf32> to vector<5x8xf32>
    %91 = vector.shape_cast %88 : vector<5x8xf32> to vector<1x5x8xf32>
    tpu.vector_store %arg6[%c0_27, %c0_28, %c0_29], %91 {strides = array<i32>} : memref<2x5x8xf32, #tpu.memory_space<vmem>>, vector<1x5x8xf32>,
    %92 = vector.extract_strided_slice %86 {offsets = [0, 128], sizes = [8, 5], strides = [1, 1]} : vector<8x133xf32> to vector<8x5xf32>
    %93 = tpu.transpose %92, [1, 0] : vector<8x5xf32> -> vector<5x8xf32>
    %c1 = arith.constant 1 : index
    %c0_30 = arith.constant 0 : index
    %c0_31 = arith.constant 0 : index
    %94 = vector.load %arg6[%c1, %c0_30, %c0_31] : memref<2x5x8xf32, #tpu.memory_space<vmem>>, vector<1x5x8xf32>
    %95 = vector.shape_cast %94 : vector<1x5x8xf32> to vector<5x8xf32>
    %96 = vector.shape_cast %93 : vector<5x8xf32> to vector<1x5x8xf32>
    tpu.vector_store %arg6[%c1, %c0_30, %c0_31], %96 {strides = array<i32>} : memref<2x5x8xf32, #tpu.memory_space<vmem>>, vector<1x5x8xf32>,
    return
  }
  func.func @transform_0(%arg0: i32) -> (i32, i32) {
    %c0_i32 = arith.constant 0 : i32
    %c0_i32_0 = arith.constant 0 : i32
    return %c0_i32, %arg0 : i32, i32
  }
  func.func @transform_1(%arg0: i32) -> (i32, i32) {
    %c0_i32 = arith.constant 0 : i32
    %c0_i32_0 = arith.constant 0 : i32
    %c0_i32_1 = arith.constant 0 : i32
    return %c0_i32, %c0_i32_0 : i32, i32
  }
  func.func @transform_2(%arg0: i32) -> (i32, i32, i32) {
    %c0_i32 = arith.constant 0 : i32
    %c0_i32_0 = arith.constant 0 : i32
    %c0_i32_1 = arith.constant 0 : i32
    %c0_i32_2 = arith.constant 0 : i32
    return %c0_i32, %c0_i32_0, %c0_i32_1 : i32, i32, i32
  }
  func.func @transform_3(%arg0: i32) -> (i32, i32, i32) {
    %c0_i32 = arith.constant 0 : i32
    %c0_i32_0 = arith.constant 0 : i32
    %c0_i32_1 = arith.constant 0 : i32
    %c0_i32_2 = arith.constant 0 : i32
    return %c0_i32, %c0_i32_0, %c0_i32_1 : i32, i32, i32
  }
  func.func @transform_4(%arg0: i32) -> (i32, i32) {
    %c0_i32 = arith.constant 0 : i32
    %c0_i32_0 = arith.constant 0 : i32
    %c0_i32_1 = arith.constant 0 : i32
    return %c0_i32, %c0_i32_0 : i32, i32
  }
  func.func @transform_5(%arg0: i32) -> (i32, i32, i32) {
    %c0_i32 = arith.constant 0 : i32
    %c0_i32_0 = arith.constant 0 : i32
    %c0_i32_1 = arith.constant 0 : i32
    return %arg0, %c0_i32, %c0_i32_0 : i32, i32, i32
  }
}

</mosaic_0001>

<llo_original>
// kernel: tpu_custom_call.1
$region0: #{tpu_custom_call.1}
  #allocation0 [shape = 'u32[]', space=smem, size = 0x4, offset = 0x4, fixed_abs, tag = 'smem constant byte address 0x4 - core index']
  #allocation1 [shape = 'u32[144,128]{1,0:T(1,128)}', space=vmem, size = 0x12000, scoped, tag = 'internal scratch']
  %s0 = inlined_call_operand.vmem [shape: f32[9,256], index: 0, kind: input, shape index: {}]
  %s1 = inlined_call_operand.vmem [shape: f32[8,9], index: 1, kind: input, shape index: {}]
  %s2 = inlined_call_operand.vmem [shape: f32[9,8,8], index: 2, kind: input, shape index: {}]
  %s3 = inlined_call_operand.vmem [shape: f32[5,8,8], index: 3, kind: input, shape index: {}]
  %s4 = inlined_call_operand.vmem [shape: f32[8,3], index: 4, kind: input, shape index: {}]
  %s5 = inlined_call_operand.vmem [shape: f32[2,5,8], index: 5, kind: output, shape index: {}]
  %s6 = sld [smem:[#allocation0]]
  $region30: #{tpu_custom_call.1} parent=0
    _
  %s8 = ssub.s32 1, %s6
  %s9 = scalar_select 0, %s8, %s6
  // Predicated region
  $region2: #{tpu_custom_call.1} parent=0 // pred_check
    _
  $region3: #{tpu_custom_call.1} parent=0 // pred_check_branch
    %11 = sbr.rel (0) target = $region5
  $region4: #{tpu_custom_call.1} parent=0 // pred_region
    _
  $region5: #{tpu_custom_call.1} parent=0 // pred_fallthru
    _
  // Predicated region
  $region6: #{tpu_custom_call.1} parent=0 // pred_check
    _
  $region7: #{tpu_custom_call.1} parent=0 // pred_check_branch
    %13 = sbr.rel (0) target = $region9
  $region8: #{tpu_custom_call.1} parent=0 // pred_region
    _
  $region9: #{tpu_custom_call.1} parent=0 // pred_fallthru
    _
  // Predicated region
  $region10: #{tpu_custom_call.1} parent=0 // pred_check
    _
  $region11: #{tpu_custom_call.1} parent=0 // pred_check_branch
    %15 = sbr.rel (0) target = $region13
  $region12: #{tpu_custom_call.1} parent=0 // pred_region
    _
  $region13: #{tpu_custom_call.1} parent=0 // pred_fallthru
    _
  // Predicated region
  $region14: #{tpu_custom_call.1} parent=0 // pred_check
    _
  $region15: #{tpu_custom_call.1} parent=0 // pred_check_branch
    %17 = sbr.rel (0) target = $region17
  $region16: #{tpu_custom_call.1} parent=0 // pred_region
    _
  $region17: #{tpu_custom_call.1} parent=0 // pred_fallthru
    _
  // Predicated region
  $region18: #{tpu_custom_call.1} parent=0 // pred_check
    _
  $region19: #{tpu_custom_call.1} parent=0 // pred_check_branch
    %19 = sbr.rel (0) target = $region21
  $region20: #{tpu_custom_call.1} parent=0 // pred_region
    _
  $region21: #{tpu_custom_call.1} parent=0 // pred_fallthru
    _
  %v20 = vld [vmem:[%s0] sm:$0xff]
  %v21 = vld [vmem:[%s0 + $0x8] sm:$0xff]
  %v22 = vld [vmem:[%s0 + $0x10] sm:$0x1]
  %v23 = vld [vmem:[%s0 + $0x18] sm:$0x1]
  %v24 = vld [vmem:[%s4] sm:$0xff]
  %v25 = vld [vmem:[%s1] sm:$0xff]
  %27 = vset.pattern.permute.xlu0 0
  %28 = vperm.xlu0 %27, %v24
  %v29 = vpop.permute.xlu0 %28
  %vm31 = vcmask 72704
  %v33 = vsel %vm31, %v25, 0
  %vm35 = vcmask 1040384
  %v37 = vsel %vm35, %v22, 0
  %v40 = vsel %vm35, %v23, 0
  %42 = vmatprep.subr.mxu0 %v21
  %43 = vmatpush1.msra.mxu0 %v20
  %44 = vmatprep.subr.mxu0 %v40
  %45 = vmatpush1.msra.mxu0 %v37
  %46 = vmatprep.subr.mxu0 0.0
  %47 = vmatpush1.msra.mxu0 0.0
  %48 = vmatprep.subr.mxu0 0.0
  %49 = vmatpush1.msra.mxu0 0.0
  %50 = vmatprep.subr.mxu0 0.0
  %51 = vmatpush1.msra.mxu0 0.0
  %52 = vmatprep.subr.mxu0 0.0
  %53 = vmatpush1.msra.mxu0 0.0
  %54 = vmatprep.subr.mxu0 0.0
  %55 = vmatpush1.msra.mxu0 0.0
  %56 = vmatprep.subr.mxu0 0.0
  %57 = vmatpush1.msra.mxu0 0.0
  %58 = vmatprep.subr.mxu0 0.0
  %59 = vmatpush1.msra.mxu0 0.0
  %60 = vmatprep.subr.mxu0 0.0
  %61 = vmatpush1.msra.mxu0 0.0
  %62 = vmatprep.subr.mxu0 0.0
  %63 = vmatpush1.msra.mxu0 0.0
  %64 = vmatprep.subr.mxu0 0.0
  %65 = vmatpush1.msra.mxu0 0.0
  %66 = vmatprep.subr.mxu0 0.0
  %67 = vmatpush1.msra.mxu0 0.0
  %68 = vmatprep.subr.mxu0 0.0
  %69 = vmatpush1.msra.mxu0 0.0
  %70 = vmatprep.subr.mxu0 0.0
  %71 = vmatpush1.msra.mxu0 0.0
  %72 = vmatprep.subr.mxu0 0.0
  %73 = vmatpush1.msra.mxu0 0.0
  %74 = vmatprep.subr.mxu0 0.0
  %75 = vmatpush1.msra.mxu0 0.0
  %76 = vmatprep.subr.mxu0 0.0
  %77 = vmatpush1.msra.mxu0 0.0
  %78 = vmatprep.subr.mxu0 0.0
  %79 = vmatpush1.msra.mxu0 0.0
  %80 = vmatprep.subr.mxu0 0.0
  %81 = vmatpush1.msra.mxu0 0.0
  %82 = vmatprep.subr.mxu0 0.0
  %83 = vmatpush1.msra.mxu0 0.0
  %84 = vmatprep.subr.mxu0 0.0
  %85 = vmatpush1.msra.mxu0 0.0
  %86 = vmatprep.subr.mxu0 0.0
  %87 = vmatpush1.msra.mxu0 0.0
  %88 = vmatprep.subr.mxu0 0.0
  %89 = vmatpush1.msra.mxu0 0.0
  %90 = vmatprep.subr.mxu0 0.0
  %91 = vmatpush1.msra.mxu0 0.0
  %92 = vmatprep.subr.mxu0 0.0
  %93 = vmatpush1.msra.mxu0 0.0
  %94 = vmatprep.subr.mxu0 0.0
  %95 = vmatpush1.msra.mxu0 0.0
  %96 = vmatprep.subr.mxu0 0.0
  %97 = vmatpush1.msra.mxu0 0.0
  %98 = vmatprep.subr.mxu0 0.0
  %99 = vmatpush1.msra.mxu0 0.0
  %100 = vmatprep.subr.mxu0 0.0
  %101 = vmatpush1.msra.mxu0 0.0
  %102 = vmatprep.subr.mxu0 0.0
  %103 = vmatpush1.msra.mxu0 0.0
  %104 = vmatprep.subr.mxu0 0.0
  %105 = vmatpush1.msra.mxu0 0.0
  %106 = vmatprep.mubr.f32.mxu0 0.0
  %107 = vmatmul.mubr.f32.gmra.mrb[0].mxu0 %v33
  %v108 = vpop.f32.mrb[0].mxu0
  %v109 = vadd.f32 %v29, %v108
  %v110 = vpop.f32.mrb[0].mxu0
  %v111 = vadd.f32 %v29, %v110
  %112 = vdwg.mxu0
  %v113 = vmax.f32 %v109, 0.0
  %v114 = vmax.f32 %v111, 0.0
  %v115 = vld [vmem:[%s2] sm:$0xff]
  %v116 = vld [vmem:[%s2 + $0x8] sm:$0xff]
  %v117 = vld [vmem:[%s2 + $0x10] sm:$0xff]
  %v118 = vld [vmem:[%s2 + $0x18] sm:$0xff]
  %v119 = vld [vmem:[%s2 + $0x20] sm:$0xff]
  %v120 = vld [vmem:[%s2 + $0x28] sm:$0xff]
  %v121 = vld [vmem:[%s2 + $0x30] sm:$0xff]
  %v122 = vld [vmem:[%s2 + $0x38] sm:$0xff]
  %v123 = vld [vmem:[%s2 + $0x40] sm:$0xff]
  %126 = vrot.lane.b32.xlu0 %v113, 121
  %v127 = vpop.permute.xlu0 %126
  %128 = vrot.lane.b32.xlu0 %v114, 121
  %v129 = vpop.permute.xlu0 %128
  %vm130 = vcmask 990208
  %v131 = vsel %vm130, %v127, %v129
  %vm134 = vcmask 64512
  %v136 = vsel %vm134, %v116, 0
  %138 = vmatprep.subr.mxu0 %v129
  %139 = vmatpush1.msra.mxu0 %v131
  %140 = vmatprep.subr.mxu0 0.0
  %141 = vmatpush1.msra.mxu0 0.0
  %142 = vmatprep.subr.mxu0 0.0
  %143 = vmatpush1.msra.mxu0 0.0
  %144 = vmatprep.subr.mxu0 0.0
  %145 = vmatpush1.msra.mxu0 0.0
  %146 = vmatprep.subr.mxu0 0.0
  %147 = vmatpush1.msra.mxu0 0.0
  %148 = vmatprep.subr.mxu0 0.0
  %149 = vmatpush1.msra.mxu0 0.0
  %150 = vmatprep.subr.mxu0 0.0
  %151 = vmatpush1.msra.mxu0 0.0
  %152 = vmatprep.subr.mxu0 0.0
  %153 = vmatpush1.msra.mxu0 0.0
  %154 = vmatprep.subr.mxu0 0.0
  %155 = vmatpush1.msra.mxu0 0.0
  %156 = vmatprep.subr.mxu0 0.0
  %157 = vmatpush1.msra.mxu0 0.0
  %158 = vmatprep.subr.mxu0 0.0
  %159 = vmatpush1.msra.mxu0 0.0
  %160 = vmatprep.subr.mxu0 0.0
  %161 = vmatpush1.msra.mxu0 0.0
  %162 = vmatprep.subr.mxu0 0.0
  %163 = vmatpush1.msra.mxu0 0.0
  %164 = vmatprep.subr.mxu0 0.0
  %165 = vmatpush1.msra.mxu0 0.0
  %166 = vmatprep.subr.mxu0 0.0
  %167 = vmatpush1.msra.mxu0 0.0
  %168 = vmatprep.subr.mxu0 0.0
  %169 = vmatpush1.msra.mxu0 0.0
  %170 = vmatprep.subr.mxu0 0.0
  %171 = vmatpush1.msra.mxu0 0.0
  %172 = vmatprep.subr.mxu0 0.0
  %173 = vmatpush1.msra.mxu0 0.0
  %174 = vmatprep.subr.mxu0 0.0
  %175 = vmatpush1.msra.mxu0 0.0
  %176 = vmatprep.subr.mxu0 0.0
  %177 = vmatpush1.msra.mxu0 0.0
  %178 = vmatprep.subr.mxu0 0.0
  %179 = vmatpush1.msra.mxu0 0.0
  %180 = vmatprep.subr.mxu0 0.0
  %181 = vmatpush1.msra.mxu0 0.0
  %182 = vmatprep.subr.mxu0 0.0
  %183 = vmatpush1.msra.mxu0 0.0
  %184 = vmatprep.subr.mxu0 0.0
  %185 = vmatpush1.msra.mxu0 0.0
  %186 = vmatprep.subr.mxu0 0.0
  %187 = vmatpush1.msra.mxu0 0.0
  %188 = vmatprep.subr.mxu0 0.0
  %189 = vmatpush1.msra.mxu0 0.0
  %190 = vmatprep.subr.mxu0 0.0
  %191 = vmatpush1.msra.mxu0 0.0
  %192 = vmatprep.subr.mxu0 0.0
  %193 = vmatpush1.msra.mxu0 0.0
  %194 = vmatprep.subr.mxu0 0.0
  %195 = vmatpush1.msra.mxu0 0.0
  %196 = vmatprep.subr.mxu0 0.0
  %197 = vmatpush1.msra.mxu0 0.0
  %198 = vmatprep.subr.mxu0 0.0
  %199 = vmatpush1.msra.mxu0 0.0
  %200 = vmatprep.subr.mxu0 0.0
  %201 = vmatpush1.msra.mxu0 0.0
  %202 = vmatprep.mubr.f32.mxu0 0.0
  %203 = vmatmul.mubr.f32.gmra.mrb[0].mxu0 %v136
  %v204 = vpop.f32.mrb[0].mxu0
  %v205 = vadd.f32 0.0, %v204
  %v206 = vpop.f32.mrb[0].mxu0
  %v207 = vadd.f32 0.0, %v206
  %208 = vdwg.mxu0
  %v210 = vsel %vm134, %v115, 0
  %212 = vmatprep.subr.mxu0 %v114
  %213 = vmatpush1.msra.mxu0 %v113
  %214 = vmatprep.subr.mxu0 0.0
  %215 = vmatpush1.msra.mxu0 0.0
  %216 = vmatprep.subr.mxu0 0.0
  %217 = vmatpush1.msra.mxu0 0.0
  %218 = vmatprep.subr.mxu0 0.0
  %219 = vmatpush1.msra.mxu0 0.0
  %220 = vmatprep.subr.mxu0 0.0
  %221 = vmatpush1.msra.mxu0 0.0
  %222 = vmatprep.subr.mxu0 0.0
  %223 = vmatpush1.msra.mxu0 0.0
  %224 = vmatprep.subr.mxu0 0.0
  %225 = vmatpush1.msra.mxu0 0.0
  %226 = vmatprep.subr.mxu0 0.0
  %227 = vmatpush1.msra.mxu0 0.0
  %228 = vmatprep.subr.mxu0 0.0
  %229 = vmatpush1.msra.mxu0 0.0
  %230 = vmatprep.subr.mxu0 0.0
  %231 = vmatpush1.msra.mxu0 0.0
  %232 = vmatprep.subr.mxu0 0.0
  %233 = vmatpush1.msra.mxu0 0.0
  %234 = vmatprep.subr.mxu0 0.0
  %235 = vmatpush1.msra.mxu0 0.0
  %236 = vmatprep.subr.mxu0 0.0
  %237 = vmatpush1.msra.mxu0 0.0
  %238 = vmatprep.subr.mxu0 0.0
  %239 = vmatpush1.msra.mxu0 0.0
  %240 = vmatprep.subr.mxu0 0.0
  %241 = vmatpush1.msra.mxu0 0.0
  %242 = vmatprep.subr.mxu0 0.0
  %243 = vmatpush1.msra.mxu0 0.0
  %244 = vmatprep.subr.mxu0 0.0
  %245 = vmatpush1.msra.mxu0 0.0
  %246 = vmatprep.subr.mxu0 0.0
  %247 = vmatpush1.msra.mxu0 0.0
  %248 = vmatprep.subr.mxu0 0.0
  %249 = vmatpush1.msra.mxu0 0.0
  %250 = vmatprep.subr.mxu0 0.0
  %251 = vmatpush1.msra.mxu0 0.0
  %252 = vmatprep.subr.mxu0 0.0
  %253 = vmatpush1.msra.mxu0 0.0
  %254 = vmatprep.subr.mxu0 0.0
  %255 = vmatpush1.msra.mxu0 0.0
  %256 = vmatprep.subr.mxu0 0.0
  %257 = vmatpush1.msra.mxu0 0.0
  %258 = vmatprep.subr.mxu0 0.0
  %259 = vmatpush1.msra.mxu0 0.0
  %260 = vmatprep.subr.mxu0 0.0
  %261 = vmatpush1.msra.mxu0 0.0
  %262 = vmatprep.subr.mxu0 0.0
  %263 = vmatpush1.msra.mxu0 0.0
  %264 = vmatprep.subr.mxu0 0.0
  %265 = vmatpush1.msra.mxu0 0.0
  %266 = vmatprep.subr.mxu0 0.0
  %267 = vmatpush1.msra.mxu0 0.0
  %268 = vmatprep.subr.mxu0 0.0
  %269 = vmatpush1.msra.mxu0 0.0
  %270 = vmatprep.subr.mxu0 0.0
  %271 = vmatpush1.msra.mxu0 0.0
  %272 = vmatprep.subr.mxu0 0.0
  %273 = vmatpush1.msra.mxu0 0.0
  %274 = vmatprep.subr.mxu0 0.0
  %275 = vmatpush1.msra.mxu0 0.0
  %276 = vmatprep.mubr.f32.mxu0 0.0
  %277 = vmatmul.mubr.f32.gmra.mrb[0].mxu0 %v210
  %v278 = vpop.f32.mrb[0].mxu0
  %v279 = vadd.f32 %v205, %v278
  %v280 = vpop.f32.mrb[0].mxu0
  %v281 = vadd.f32 %v207, %v280
  %282 = vdwg.mxu0
  %283 = vrot.lane.b32.xlu0 %v113, 114
  %v284 = vpop.permute.xlu0 %283
  %285 = vrot.lane.b32.xlu0 %v114, 114
  %v286 = vpop.permute.xlu0 %285
  %vm287 = vcmask 932864
  %v288 = vsel %vm287, %v284, %v286
  %v292 = vsel %vm134, %v117, 0
  %294 = vmatprep.subr.mxu0 %v286
  %295 = vmatpush1.msra.mxu0 %v288
  %296 = vmatprep.subr.mxu0 0.0
  %297 = vmatpush1.msra.mxu0 0.0
  %298 = vmatprep.subr.mxu0 0.0
  %299 = vmatpush1.msra.mxu0 0.0
  %300 = vmatprep.subr.mxu0 0.0
  %301 = vmatpush1.msra.mxu0 0.0
  %302 = vmatprep.subr.mxu0 0.0
  %303 = vmatpush1.msra.mxu0 0.0
  %304 = vmatprep.subr.mxu0 0.0
  %305 = vmatpush1.msra.mxu0 0.0
  %306 = vmatprep.subr.mxu0 0.0
  %307 = vmatpush1.msra.mxu0 0.0
  %308 = vmatprep.subr.mxu0 0.0
  %309 = vmatpush1.msra.mxu0 0.0
  %310 = vmatprep.subr.mxu0 0.0
  %311 = vmatpush1.msra.mxu0 0.0
  %312 = vmatprep.subr.mxu0 0.0
  %313 = vmatpush1.msra.mxu0 0.0
  %314 = vmatprep.subr.mxu0 0.0
  %315 = vmatpush1.msra.mxu0 0.0
  %316 = vmatprep.subr.mxu0 0.0
  %317 = vmatpush1.msra.mxu0 0.0
  %318 = vmatprep.subr.mxu0 0.0
  %319 = vmatpush1.msra.mxu0 0.0
  %320 = vmatprep.subr.mxu0 0.0
  %321 = vmatpush1.msra.mxu0 0.0
  %322 = vmatprep.subr.mxu0 0.0
  %323 = vmatpush1.msra.mxu0 0.0
  %324 = vmatprep.subr.mxu0 0.0
  %325 = vmatpush1.msra.mxu0 0.0
  %326 = vmatprep.subr.mxu0 0.0
  %327 = vmatpush1.msra.mxu0 0.0
  %328 = vmatprep.subr.mxu0 0.0
  %329 = vmatpush1.msra.mxu0 0.0
  %330 = vmatprep.subr.mxu0 0.0
  %331 = vmatpush1.msra.mxu0 0.0
  %332 = vmatprep.subr.mxu0 0.0
  %333 = vmatpush1.msra.mxu0 0.0
  %334 = vmatprep.subr.mxu0 0.0
  %335 = vmatpush1.msra.mxu0 0.0
  %336 = vmatprep.subr.mxu0 0.0
  %337 = vmatpush1.msra.mxu0 0.0
  %338 = vmatprep.subr.mxu0 0.0
  %339 = vmatpush1.msra.mxu0 0.0
  %340 = vmatprep.subr.mxu0 0.0
  %341 = vmatpush1.msra.mxu0 0.0
  %342 = vmatprep.subr.mxu0 0.0
  %343 = vmatpush1.msra.mxu0 0.0
  %344 = vmatprep.subr.mxu0 0.0
  %345 = vmatpush1.msra.mxu0 0.0
  %346 = vmatprep.subr.mxu0 0.0
  %347 = vmatpush1.msra.mxu0 0.0
  %348 = vmatprep.subr.mxu0 0.0
  %349 = vmatpush1.msra.mxu0 0.0
  %350 = vmatprep.subr.mxu0 0.0
  %351 = vmatpush1.msra.mxu0 0.0
  %352 = vmatprep.subr.mxu0 0.0
  %353 = vmatpush1.msra.mxu0 0.0
  %354 = vmatprep.subr.mxu0 0.0
  %355 = vmatpush1.msra.mxu0 0.0
  %356 = vmatprep.subr.mxu0 0.0
  %357 = vmatpush1.msra.mxu0 0.0
  %358 = vmatprep.mubr.f32.mxu0 0.0
  %359 = vmatmul.mubr.f32.gmra.mrb[0].mxu0 %v292
  %v360 = vpop.f32.mrb[0].mxu0
  %v361 = vadd.f32 0.0, %v360
  %v362 = vpop.f32.mrb[0].mxu0
  %v363 = vadd.f32 0.0, %v362
  %364 = vdwg.mxu0
  %v365 = vadd.f32 %v279, %v361
  %v366 = vadd.f32 %v281, %v363
  %367 = vrot.lane.b32.xlu0 %v113, 127
  %v368 = vpop.permute.xlu0 %367
  %369 = vrot.lane.b32.xlu0 %v114, 127
  %v370 = vpop.permute.xlu0 %369
  %vm371 = vcmask 1039360
  %v372 = vsel %vm371, %v368, %v370
  %v376 = vsel %vm134, %v118, 0
  %378 = vmatprep.subr.mxu0 %v370
  %379 = vmatpush1.msra.mxu0 %v372
  %380 = vmatprep.subr.mxu0 0.0
  %381 = vmatpush1.msra.mxu0 0.0
  %382 = vmatprep.subr.mxu0 0.0
  %383 = vmatpush1.msra.mxu0 0.0
  %384 = vmatprep.subr.mxu0 0.0
  %385 = vmatpush1.msra.mxu0 0.0
  %386 = vmatprep.subr.mxu0 0.0
  %387 = vmatpush1.msra.mxu0 0.0
  %388 = vmatprep.subr.mxu0 0.0
  %389 = vmatpush1.msra.mxu0 0.0
  %390 = vmatprep.subr.mxu0 0.0
  %391 = vmatpush1.msra.mxu0 0.0
  %392 = vmatprep.subr.mxu0 0.0
  %393 = vmatpush1.msra.mxu0 0.0
  %394 = vmatprep.subr.mxu0 0.0
  %395 = vmatpush1.msra.mxu0 0.0
  %396 = vmatprep.subr.mxu0 0.0
  %397 = vmatpush1.msra.mxu0 0.0
  %398 = vmatprep.subr.mxu0 0.0
  %399 = vmatpush1.msra.mxu0 0.0
  %400 = vmatprep.subr.mxu0 0.0
  %401 = vmatpush1.msra.mxu0 0.0
  %402 = vmatprep.subr.mxu0 0.0
  %403 = vmatpush1.msra.mxu0 0.0
  %404 = vmatprep.subr.mxu0 0.0
  %405 = vmatpush1.msra.mxu0 0.0
  %406 = vmatprep.subr.mxu0 0.0
  %407 = vmatpush1.msra.mxu0 0.0
  %408 = vmatprep.subr.mxu0 0.0
  %409 = vmatpush1.msra.mxu0 0.0
  %410 = vmatprep.subr.mxu0 0.0
  %411 = vmatpush1.msra.mxu0 0.0
  %412 = vmatprep.subr.mxu0 0.0
  %413 = vmatpush1.msra.mxu0 0.0
  %414 = vmatprep.subr.mxu0 0.0
  %415 = vmatpush1.msra.mxu0 0.0
  %416 = vmatprep.subr.mxu0 0.0
  %417 = vmatpush1.msra.mxu0 0.0
  %418 = vmatprep.subr.mxu0 0.0
  %419 = vmatpush1.msra.mxu0 0.0
  %420 = vmatprep.subr.mxu0 0.0
  %421 = vmatpush1.msra.mxu0 0.0
  %422 = vmatprep.subr.mxu0 0.0
  %423 = vmatpush1.msra.mxu0 0.0
  %424 = vmatprep.subr.mxu0 0.0
  %425 = vmatpush1.msra.mxu0 0.0
  %426 = vmatprep.subr.mxu0 0.0
  %427 = vmatpush1.msra.mxu0 0.0
  %428 = vmatprep.subr.mxu0 0.0
  %429 = vmatpush1.msra.mxu0 0.0
  %430 = vmatprep.subr.mxu0 0.0
  %431 = vmatpush1.msra.mxu0 0.0
  %432 = vmatprep.subr.mxu0 0.0
  %433 = vmatpush1.msra.mxu0 0.0
  %434 = vmatprep.subr.mxu0 0.0
  %435 = vmatpush1.msra.mxu0 0.0
  %436 = vmatprep.subr.mxu0 0.0
  %437 = vmatpush1.msra.mxu0 0.0
  %438 = vmatprep.subr.mxu0 0.0
  %439 = vmatpush1.msra.mxu0 0.0
  %440 = vmatprep.subr.mxu0 0.0
  %441 = vmatpush1.msra.mxu0 0.0
  %442 = vmatprep.mubr.f32.mxu0 0.0
  %443 = vmatmul.mubr.f32.gmra.mrb[0].mxu0 %v376
  %v444 = vpop.f32.mrb[0].mxu0
  %v445 = vadd.f32 0.0, %v444
  %v446 = vpop.f32.mrb[0].mxu0
  %v447 = vadd.f32 0.0, %v446
  %448 = vdwg.mxu0
  %v449 = vadd.f32 %v365, %v445
  %v450 = vadd.f32 %v366, %v447
  %451 = vrot.lane.b32.xlu0 %v113, 120
  %v452 = vpop.permute.xlu0 %451
  %453 = vrot.lane.b32.xlu0 %v114, 120
  %v454 = vpop.permute.xlu0 %453
  %vm455 = vcmask 982016
  %v456 = vsel %vm455, %v452, %v454
  %v460 = vsel %vm134, %v119, 0
  %462 = vmatprep.subr.mxu0 %v454
  %463 = vmatpush1.msra.mxu0 %v456
  %464 = vmatprep.subr.mxu0 0.0
  %465 = vmatpush1.msra.mxu0 0.0
  %466 = vmatprep.subr.mxu0 0.0
  %467 = vmatpush1.msra.mxu0 0.0
  %468 = vmatprep.subr.mxu0 0.0
  %469 = vmatpush1.msra.mxu0 0.0
  %470 = vmatprep.subr.mxu0 0.0
  %471 = vmatpush1.msra.mxu0 0.0
  %472 = vmatprep.subr.mxu0 0.0
  %473 = vmatpush1.msra.mxu0 0.0
  %474 = vmatprep.subr.mxu0 0.0
  %475 = vmatpush1.msra.mxu0 0.0
  %476 = vmatprep.subr.mxu0 0.0
  %477 = vmatpush1.msra.mxu0 0.0
  %478 = vmatprep.subr.mxu0 0.0
  %479 = vmatpush1.msra.mxu0 0.0
  %480 = vmatprep.subr.mxu0 0.0
  %481 = vmatpush1.msra.mxu0 0.0
  %482 = vmatprep.subr.mxu0 0.0
  %483 = vmatpush1.msra.mxu0 0.0
  %484 = vmatprep.subr.mxu0 0.0
  %485 = vmatpush1.msra.mxu0 0.0
  %486 = vmatprep.subr.mxu0 0.0
  %487 = vmatpush1.msra.mxu0 0.0
  %488 = vmatprep.subr.mxu0 0.0
  %489 = vmatpush1.msra.mxu0 0.0
  %490 = vmatprep.subr.mxu0 0.0
  %491 = vmatpush1.msra.mxu0 0.0
  %492 = vmatprep.subr.mxu0 0.0
  %493 = vmatpush1.msra.mxu0 0.0
  %494 = vmatprep.subr.mxu0 0.0
  %495 = vmatpush1.msra.mxu0 0.0
  %496 = vmatprep.subr.mxu0 0.0
  %497 = vmatpush1.msra.mxu0 0.0
  %498 = vmatprep.subr.mxu0 0.0
  %499 = vmatpush1.msra.mxu0 0.0
  %500 = vmatprep.subr.mxu0 0.0
  %501 = vmatpush1.msra.mxu0 0.0
  %502 = vmatprep.subr.mxu0 0.0
  %503 = vmatpush1.msra.mxu0 0.0
  %504 = vmatprep.subr.mxu0 0.0
  %505 = vmatpush1.msra.mxu0 0.0
  %506 = vmatprep.subr.mxu0 0.0
  %507 = vmatpush1.msra.mxu0 0.0
  %508 = vmatprep.subr.mxu0 0.0
  %509 = vmatpush1.msra.mxu0 0.0
  %510 = vmatprep.subr.mxu0 0.0
  %511 = vmatpush1.msra.mxu0 0.0
  %512 = vmatprep.subr.mxu0 0.0
  %513 = vmatpush1.msra.mxu0 0.0
  %514 = vmatprep.subr.mxu0 0.0
  %515 = vmatpush1.msra.mxu0 0.0
  %516 = vmatprep.subr.mxu0 0.0
  %517 = vmatpush1.msra.mxu0 0.0
  %518 = vmatprep.subr.mxu0 0.0
  %519 = vmatpush1.msra.mxu0 0.0
  %520 = vmatprep.subr.mxu0 0.0
  %521 = vmatpush1.msra.mxu0 0.0
  %522 = vmatprep.subr.mxu0 0.0
  %523 = vmatpush1.msra.mxu0 0.0
  %524 = vmatprep.subr.mxu0 0.0
  %525 = vmatpush1.msra.mxu0 0.0
  %526 = vmatprep.mubr.f32.mxu0 0.0
  %527 = vmatmul.mubr.f32.gmra.mrb[0].mxu0 %v460
  %v528 = vpop.f32.mrb[0].mxu0
  %v529 = vadd.f32 0.0, %v528
  %v530 = vpop.f32.mrb[0].mxu0
  %v531 = vadd.f32 0.0, %v530
  %532 = vdwg.mxu0
  %v533 = vadd.f32 %v449, %v529
  %v534 = vadd.f32 %v450, %v531
  %535 = vrot.lane.b32.xlu0 %v113, 113
  %v536 = vpop.permute.xlu0 %535
  %537 = vrot.lane.b32.xlu0 %v114, 113
  %v538 = vpop.permute.xlu0 %537
  %vm539 = vcmask 924672
  %v540 = vsel %vm539, %v536, %v538
  %v544 = vsel %vm134, %v120, 0
  %546 = vmatprep.subr.mxu0 %v538
  %547 = vmatpush1.msra.mxu0 %v540
  %548 = vmatprep.subr.mxu0 0.0
  %549 = vmatpush1.msra.mxu0 0.0
  %550 = vmatprep.subr.mxu0 0.0
  %551 = vmatpush1.msra.mxu0 0.0
  %552 = vmatprep.subr.mxu0 0.0
  %553 = vmatpush1.msra.mxu0 0.0
  %554 = vmatprep.subr.mxu0 0.0
  %555 = vmatpush1.msra.mxu0 0.0
  %556 = vmatprep.subr.mxu0 0.0
  %557 = vmatpush1.msra.mxu0 0.0
  %558 = vmatprep.subr.mxu0 0.0
  %559 = vmatpush1.msra.mxu0 0.0
  %560 = vmatprep.subr.mxu0 0.0
  %561 = vmatpush1.msra.mxu0 0.0
  %562 = vmatprep.subr.mxu0 0.0
  %563 = vmatpush1.msra.mxu0 0.0
  %564 = vmatprep.subr.mxu0 0.0
  %565 = vmatpush1.msra.mxu0 0.0
  %566 = vmatprep.subr.mxu0 0.0
  %567 = vmatpush1.msra.mxu0 0.0
  %568 = vmatprep.subr.mxu0 0.0
  %569 = vmatpush1.msra.mxu0 0.0
  %570 = vmatprep.subr.mxu0 0.0
  %571 = vmatpush1.msra.mxu0 0.0
  %572 = vmatprep.subr.mxu0 0.0
  %573 = vmatpush1.msra.mxu0 0.0
  %574 = vmatprep.subr.mxu0 0.0
  %575 = vmatpush1.msra.mxu0 0.0
  %576 = vmatprep.subr.mxu0 0.0
  %577 = vmatpush1.msra.mxu0 0.0
  %578 = vmatprep.subr.mxu0 0.0
  %579 = vmatpush1.msra.mxu0 0.0
  %580 = vmatprep.subr.mxu0 0.0
  %581 = vmatpush1.msra.mxu0 0.0
  %582 = vmatprep.subr.mxu0 0.0
  %583 = vmatpush1.msra.mxu0 0.0
  %584 = vmatprep.subr.mxu0 0.0
  %585 = vmatpush1.msra.mxu0 0.0
  %586 = vmatprep.subr.mxu0 0.0
  %587 = vmatpush1.msra.mxu0 0.0
  %588 = vmatprep.subr.mxu0 0.0
  %589 = vmatpush1.msra.mxu0 0.0
  %590 = vmatprep.subr.mxu0 0.0
  %591 = vmatpush1.msra.mxu0 0.0
  %592 = vmatprep.subr.mxu0 0.0
  %593 = vmatpush1.msra.mxu0 0.0
  %594 = vmatprep.subr.mxu0 0.0
  %595 = vmatpush1.msra.mxu0 0.0
  %596 = vmatprep.subr.mxu0 0.0
  %597 = vmatpush1.msra.mxu0 0.0
  %598 = vmatprep.subr.mxu0 0.0
  %599 = vmatpush1.msra.mxu0 0.0
  %600 = vmatprep.subr.mxu0 0.0
  %601 = vmatpush1.msra.mxu0 0.0
  %602 = vmatprep.subr.mxu0 0.0
  %603 = vmatpush1.msra.mxu0 0.0
  %604 = vmatprep.subr.mxu0 0.0
  %605 = vmatpush1.msra.mxu0 0.0
  %606 = vmatprep.subr.mxu0 0.0
  %607 = vmatpush1.msra.mxu0 0.0
  %608 = vmatprep.subr.mxu0 0.0
  %609 = vmatpush1.msra.mxu0 0.0
  %610 = vmatprep.mubr.f32.mxu0 0.0
  %611 = vmatmul.mubr.f32.gmra.mrb[0].mxu0 %v544
  %v612 = vpop.f32.mrb[0].mxu0
  %v613 = vadd.f32 0.0, %v612
  %v614 = vpop.f32.mrb[0].mxu0
  %v615 = vadd.f32 0.0, %v614
  %616 = vdwg.mxu0
  %v617 = vadd.f32 %v533, %v613
  %v618 = vadd.f32 %v534, %v615
  %619 = vrot.lane.b32.xlu0 %v113, 126
  %v620 = vpop.permute.xlu0 %619
  %621 = vrot.lane.b32.xlu0 %v114, 126
  %v622 = vpop.permute.xlu0 %621
  %vm623 = vcmask 1031168
  %v624 = vsel %vm623, %v620, %v622
  %v628 = vsel %vm134, %v121, 0
  %630 = vmatprep.subr.mxu0 %v622
  %631 = vmatpush1.msra.mxu0 %v624
  %632 = vmatprep.subr.mxu0 0.0
  %633 = vmatpush1.msra.mxu0 0.0
  %634 = vmatprep.subr.mxu0 0.0
  %635 = vmatpush1.msra.mxu0 0.0
  %636 = vmatprep.subr.mxu0 0.0
  %637 = vmatpush1.msra.mxu0 0.0
  %638 = vmatprep.subr.mxu0 0.0
  %639 = vmatpush1.msra.mxu0 0.0
  %640 = vmatprep.subr.mxu0 0.0
  %641 = vmatpush1.msra.mxu0 0.0
  %642 = vmatprep.subr.mxu0 0.0
  %643 = vmatpush1.msra.mxu0 0.0
  %644 = vmatprep.subr.mxu0 0.0
  %645 = vmatpush1.msra.mxu0 0.0
  %646 = vmatprep.subr.mxu0 0.0
  %647 = vmatpush1.msra.mxu0 0.0
  %648 = vmatprep.subr.mxu0 0.0
  %649 = vmatpush1.msra.mxu0 0.0
  %650 = vmatprep.subr.mxu0 0.0
  %651 = vmatpush1.msra.mxu0 0.0
  %652 = vmatprep.subr.mxu0 0.0
  %653 = vmatpush1.msra.mxu0 0.0
  %654 = vmatprep.subr.mxu0 0.0
  %655 = vmatpush1.msra.mxu0 0.0
  %656 = vmatprep.subr.mxu0 0.0
  %657 = vmatpush1.msra.mxu0 0.0
  %658 = vmatprep.subr.mxu0 0.0
  %659 = vmatpush1.msra.mxu0 0.0
  %660 = vmatprep.subr.mxu0 0.0
  %661 = vmatpush1.msra.mxu0 0.0
  %662 = vmatprep.subr.mxu0 0.0
  %663 = vmatpush1.msra.mxu0 0.0
  %664 = vmatprep.subr.mxu0 0.0
  %665 = vmatpush1.msra.mxu0 0.0
  %666 = vmatprep.subr.mxu0 0.0
  %667 = vmatpush1.msra.mxu0 0.0
  %668 = vmatprep.subr.mxu0 0.0
  %669 = vmatpush1.msra.mxu0 0.0
  %670 = vmatprep.subr.mxu0 0.0
  %671 = vmatpush1.msra.mxu0 0.0
  %672 = vmatprep.subr.mxu0 0.0
  %673 = vmatpush1.msra.mxu0 0.0
  %674 = vmatprep.subr.mxu0 0.0
  %675 = vmatpush1.msra.mxu0 0.0
  %676 = vmatprep.subr.mxu0 0.0
  %677 = vmatpush1.msra.mxu0 0.0
  %678 = vmatprep.subr.mxu0 0.0
  %679 = vmatpush1.msra.mxu0 0.0
  %680 = vmatprep.subr.mxu0 0.0
  %681 = vmatpush1.msra.mxu0 0.0
  %682 = vmatprep.subr.mxu0 0.0
  %683 = vmatpush1.msra.mxu0 0.0
  %684 = vmatprep.subr.mxu0 0.0
  %685 = vmatpush1.msra.mxu0 0.0
  %686 = vmatprep.subr.mxu0 0.0
  %687 = vmatpush1.msra.mxu0 0.0
  %688 = vmatprep.subr.mxu0 0.0
  %689 = vmatpush1.msra.mxu0 0.0
  %690 = vmatprep.subr.mxu0 0.0
  %691 = vmatpush1.msra.mxu0 0.0
  %692 = vmatprep.subr.mxu0 0.0
  %693 = vmatpush1.msra.mxu0 0.0
  %694 = vmatprep.mubr.f32.mxu0 0.0
  %695 = vmatmul.mubr.f32.gmra.mrb[0].mxu0 %v628
  %v696 = vpop.f32.mrb[0].mxu0
  %v697 = vadd.f32 0.0, %v696
  %v698 = vpop.f32.mrb[0].mxu0
  %v699 = vadd.f32 0.0, %v698
  %700 = vdwg.mxu0
  %v701 = vadd.f32 %v617, %v697
  %v702 = vadd.f32 %v618, %v699
  %703 = vrot.lane.b32.xlu0 %v113, 119
  %v704 = vpop.permute.xlu0 %703
  %705 = vrot.lane.b32.xlu0 %v114, 119
  %v706 = vpop.permute.xlu0 %705
  %vm707 = vcmask 973824
  %v708 = vsel %vm707, %v704, %v706
  %v712 = vsel %vm134, %v122, 0
  %714 = vmatprep.subr.mxu0 %v706
  %715 = vmatpush1.msra.mxu0 %v708
  %716 = vmatprep.subr.mxu0 0.0
  %717 = vmatpush1.msra.mxu0 0.0
  %718 = vmatprep.subr.mxu0 0.0
  %719 = vmatpush1.msra.mxu0 0.0
  %720 = vmatprep.subr.mxu0 0.0
  %721 = vmatpush1.msra.mxu0 0.0
  %722 = vmatprep.subr.mxu0 0.0
  %723 = vmatpush1.msra.mxu0 0.0
  %724 = vmatprep.subr.mxu0 0.0
  %725 = vmatpush1.msra.mxu0 0.0
  %726 = vmatprep.subr.mxu0 0.0
  %727 = vmatpush1.msra.mxu0 0.0
  %728 = vmatprep.subr.mxu0 0.0
  %729 = vmatpush1.msra.mxu0 0.0
  %730 = vmatprep.subr.mxu0 0.0
  %731 = vmatpush1.msra.mxu0 0.0
  %732 = vmatprep.subr.mxu0 0.0
  %733 = vmatpush1.msra.mxu0 0.0
  %734 = vmatprep.subr.mxu0 0.0
  %735 = vmatpush1.msra.mxu0 0.0
  %736 = vmatprep.subr.mxu0 0.0
  %737 = vmatpush1.msra.mxu0 0.0
  %738 = vmatprep.subr.mxu0 0.0
  %739 = vmatpush1.msra.mxu0 0.0
  %740 = vmatprep.subr.mxu0 0.0
  %741 = vmatpush1.msra.mxu0 0.0
  %742 = vmatprep.subr.mxu0 0.0
  %743 = vmatpush1.msra.mxu0 0.0
  %744 = vmatprep.subr.mxu0 0.0
  %745 = vmatpush1.msra.mxu0 0.0
  %746 = vmatprep.subr.mxu0 0.0
  %747 = vmatpush1.msra.mxu0 0.0
  %748 = vmatprep.subr.mxu0 0.0
  %749 = vmatpush1.msra.mxu0 0.0
  %750 = vmatprep.subr.mxu0 0.0
  %751 = vmatpush1.msra.mxu0 0.0
  %752 = vmatprep.subr.mxu0 0.0
  %753 = vmatpush1.msra.mxu0 0.0
  %754 = vmatprep.subr.mxu0 0.0
  %755 = vmatpush1.msra.mxu0 0.0
  %756 = vmatprep.subr.mxu0 0.0
  %757 = vmatpush1.msra.mxu0 0.0
  %758 = vmatprep.subr.mxu0 0.0
  %759 = vmatpush1.msra.mxu0 0.0
  %760 = vmatprep.subr.mxu0 0.0
  %761 = vmatpush1.msra.mxu0 0.0
  %762 = vmatprep.subr.mxu0 0.0
  %763 = vmatpush1.msra.mxu0 0.0
  %764 = vmatprep.subr.mxu0 0.0
  %765 = vmatpush1.msra.mxu0 0.0
  %766 = vmatprep.subr.mxu0 0.0
  %767 = vmatpush1.msra.mxu0 0.0
  %768 = vmatprep.subr.mxu0 0.0
  %769 = vmatpush1.msra.mxu0 0.0
  %770 = vmatprep.subr.mxu0 0.0
  %771 = vmatpush1.msra.mxu0 0.0
  %772 = vmatprep.subr.mxu0 0.0
  %773 = vmatpush1.msra.mxu0 0.0
  %774 = vmatprep.subr.mxu0 0.0
  %775 = vmatpush1.msra.mxu0 0.0
  %776 = vmatprep.subr.mxu0 0.0
  %777 = vmatpush1.msra.mxu0 0.0
  %778 = vmatprep.mubr.f32.mxu0 0.0
  %779 = vmatmul.mubr.f32.gmra.mrb[0].mxu0 %v712
  %v780 = vpop.f32.mrb[0].mxu0
  %v781 = vadd.f32 0.0, %v780
  %v782 = vpop.f32.mrb[0].mxu0
  %v783 = vadd.f32 0.0, %v782
  %784 = vdwg.mxu0
  %v785 = vadd.f32 %v701, %v781
  %v786 = vadd.f32 %v702, %v783
  %787 = vrot.lane.b32.xlu0 %v113, 112
  %v788 = vpop.permute.xlu0 %787
  %789 = vrot.lane.b32.xlu0 %v114, 112
  %v790 = vpop.permute.xlu0 %789
  %vm791 = vcmask 916480
  %v792 = vsel %vm791, %v788, %v790
  %v796 = vsel %vm134, %v123, 0
  %798 = vmatprep.subr.mxu0 %v790
  %799 = vmatpush1.msra.mxu0 %v792
  %800 = vmatprep.subr.mxu0 0.0
  %801 = vmatpush1.msra.mxu0 0.0
  %802 = vmatprep.subr.mxu0 0.0
  %803 = vmatpush1.msra.mxu0 0.0
  %804 = vmatprep.subr.mxu0 0.0
  %805 = vmatpush1.msra.mxu0 0.0
  %806 = vmatprep.subr.mxu0 0.0
  %807 = vmatpush1.msra.mxu0 0.0
  %808 = vmatprep.subr.mxu0 0.0
  %809 = vmatpush1.msra.mxu0 0.0
  %810 = vmatprep.subr.mxu0 0.0
  %811 = vmatpush1.msra.mxu0 0.0
  %812 = vmatprep.subr.mxu0 0.0
  %813 = vmatpush1.msra.mxu0 0.0
  %814 = vmatprep.subr.mxu0 0.0
  %815 = vmatpush1.msra.mxu0 0.0
  %816 = vmatprep.subr.mxu0 0.0
  %817 = vmatpush1.msra.mxu0 0.0
  %818 = vmatprep.subr.mxu0 0.0
  %819 = vmatpush1.msra.mxu0 0.0
  %820 = vmatprep.subr.mxu0 0.0
  %821 = vmatpush1.msra.mxu0 0.0
  %822 = vmatprep.subr.mxu0 0.0
  %823 = vmatpush1.msra.mxu0 0.0
  %824 = vmatprep.subr.mxu0 0.0
  %825 = vmatpush1.msra.mxu0 0.0
  %826 = vmatprep.subr.mxu0 0.0
  %827 = vmatpush1.msra.mxu0 0.0
  %828 = vmatprep.subr.mxu0 0.0
  %829 = vmatpush1.msra.mxu0 0.0
  %830 = vmatprep.subr.mxu0 0.0
  %831 = vmatpush1.msra.mxu0 0.0
  %832 = vmatprep.subr.mxu0 0.0
  %833 = vmatpush1.msra.mxu0 0.0
  %834 = vmatprep.subr.mxu0 0.0
  %835 = vmatpush1.msra.mxu0 0.0
  %836 = vmatprep.subr.mxu0 0.0
  %837 = vmatpush1.msra.mxu0 0.0
  %838 = vmatprep.subr.mxu0 0.0
  %839 = vmatpush1.msra.mxu0 0.0
  %840 = vmatprep.subr.mxu0 0.0
  %841 = vmatpush1.msra.mxu0 0.0
  %842 = vmatprep.subr.mxu0 0.0
  %843 = vmatpush1.msra.mxu0 0.0
  %844 = vmatprep.subr.mxu0 0.0
  %845 = vmatpush1.msra.mxu0 0.0
  %846 = vmatprep.subr.mxu0 0.0
  %847 = vmatpush1.msra.mxu0 0.0
  %848 = vmatprep.subr.mxu0 0.0
  %849 = vmatpush1.msra.mxu0 0.0
  %850 = vmatprep.subr.mxu0 0.0
  %851 = vmatpush1.msra.mxu0 0.0
  %852 = vmatprep.subr.mxu0 0.0
  %853 = vmatpush1.msra.mxu0 0.0
  %854 = vmatprep.subr.mxu0 0.0
  %855 = vmatpush1.msra.mxu0 0.0
  %856 = vmatprep.subr.mxu0 0.0
  %857 = vmatpush1.msra.mxu0 0.0
  %858 = vmatprep.subr.mxu0 0.0
  %859 = vmatpush1.msra.mxu0 0.0
  %860 = vmatprep.subr.mxu0 0.0
  %861 = vmatpush1.msra.mxu0 0.0
  %862 = vmatprep.mubr.f32.mxu0 0.0
  %863 = vmatmul.mubr.f32.gmra.mrb[0].mxu0 %v796
  %v864 = vpop.f32.mrb[0].mxu0
  %v865 = vadd.f32 0.0, %v864
  %v866 = vpop.f32.mrb[0].mxu0
  %v867 = vadd.f32 0.0, %v866
  %868 = vdwg.mxu0
  %v869 = vadd.f32 %v785, %v865
  %v870 = vadd.f32 %v786, %v867
  %871 = vset.pattern.permute.xlu0 1
  %872 = vperm.xlu0 %871, %v24
  %v873 = vpop.permute.xlu0 %872
  %v875 = vadd.f32 %v869, %v873
  %v876 = vadd.f32 %v870, %v873
  %v877 = vmax.f32 %v875, 0.0
  %v878 = vmax.f32 %v876, 0.0
  %v879 = vld [vmem:[%s3] sm:$0xff]
  %v880 = vld [vmem:[%s3 + $0x8] sm:$0xff]
  %v881 = vld [vmem:[%s3 + $0x10] sm:$0xff]
  %v882 = vld [vmem:[%s3 + $0x18] sm:$0xff]
  %v883 = vld [vmem:[%s3 + $0x20] sm:$0xff]
  %886 = vrot.lane.b32.xlu0 %v877, 121
  %v887 = vpop.permute.xlu0 %886
  %888 = vrot.lane.b32.xlu0 %v878, 121
  %v889 = vpop.permute.xlu0 %888
  %v890 = vsel %vm130, %v887, %v889
  %v894 = vsel %vm134, %v880, 0
  %896 = vmatprep.subr.mxu0 %v889
  %897 = vmatpush1.msra.mxu0 %v890
  %898 = vmatprep.subr.mxu0 0.0
  %899 = vmatpush1.msra.mxu0 0.0
  %900 = vmatprep.subr.mxu0 0.0
  %901 = vmatpush1.msra.mxu0 0.0
  %902 = vmatprep.subr.mxu0 0.0
  %903 = vmatpush1.msra.mxu0 0.0
  %904 = vmatprep.subr.mxu0 0.0
  %905 = vmatpush1.msra.mxu0 0.0
  %906 = vmatprep.subr.mxu0 0.0
  %907 = vmatpush1.msra.mxu0 0.0
  %908 = vmatprep.subr.mxu0 0.0
  %909 = vmatpush1.msra.mxu0 0.0
  %910 = vmatprep.subr.mxu0 0.0
  %911 = vmatpush1.msra.mxu0 0.0
  %912 = vmatprep.subr.mxu0 0.0
  %913 = vmatpush1.msra.mxu0 0.0
  %914 = vmatprep.subr.mxu0 0.0
  %915 = vmatpush1.msra.mxu0 0.0
  %916 = vmatprep.subr.mxu0 0.0
  %917 = vmatpush1.msra.mxu0 0.0
  %918 = vmatprep.subr.mxu0 0.0
  %919 = vmatpush1.msra.mxu0 0.0
  %920 = vmatprep.subr.mxu0 0.0
  %921 = vmatpush1.msra.mxu0 0.0
  %922 = vmatprep.subr.mxu0 0.0
  %923 = vmatpush1.msra.mxu0 0.0
  %924 = vmatprep.subr.mxu0 0.0
  %925 = vmatpush1.msra.mxu0 0.0
  %926 = vmatprep.subr.mxu0 0.0
  %927 = vmatpush1.msra.mxu0 0.0
  %928 = vmatprep.subr.mxu0 0.0
  %929 = vmatpush1.msra.mxu0 0.0
  %930 = vmatprep.subr.mxu0 0.0
  %931 = vmatpush1.msra.mxu0 0.0
  %932 = vmatprep.subr.mxu0 0.0
  %933 = vmatpush1.msra.mxu0 0.0
  %934 = vmatprep.subr.mxu0 0.0
  %935 = vmatpush1.msra.mxu0 0.0
  %936 = vmatprep.subr.mxu0 0.0
  %937 = vmatpush1.msra.mxu0 0.0
  %938 = vmatprep.subr.mxu0 0.0
  %939 = vmatpush1.msra.mxu0 0.0
  %940 = vmatprep.subr.mxu0 0.0
  %941 = vmatpush1.msra.mxu0 0.0
  %942 = vmatprep.subr.mxu0 0.0
  %943 = vmatpush1.msra.mxu0 0.0
  %944 = vmatprep.subr.mxu0 0.0
  %945 = vmatpush1.msra.mxu0 0.0
  %946 = vmatprep.subr.mxu0 0.0
  %947 = vmatpush1.msra.mxu0 0.0
  %948 = vmatprep.subr.mxu0 0.0
  %949 = vmatpush1.msra.mxu0 0.0
  %950 = vmatprep.subr.mxu0 0.0
  %951 = vmatpush1.msra.mxu0 0.0
  %952 = vmatprep.subr.mxu0 0.0
  %953 = vmatpush1.msra.mxu0 0.0
  %954 = vmatprep.subr.mxu0 0.0
  %955 = vmatpush1.msra.mxu0 0.0
  %956 = vmatprep.subr.mxu0 0.0
  %957 = vmatpush1.msra.mxu0 0.0
  %958 = vmatprep.subr.mxu0 0.0
  %959 = vmatpush1.msra.mxu0 0.0
  %960 = vmatprep.mubr.f32.mxu0 0.0
  %961 = vmatmul.mubr.f32.gmra.mrb[0].mxu0 %v894
  %v962 = vpop.f32.mrb[0].mxu0
  %v963 = vadd.f32 0.0, %v962
  %v964 = vpop.f32.mrb[0].mxu0
  %v965 = vadd.f32 0.0, %v964
  %966 = vdwg.mxu0
  %v968 = vsel %vm134, %v879, 0
  %970 = vmatprep.subr.mxu0 %v878
  %971 = vmatpush1.msra.mxu0 %v877
  %972 = vmatprep.subr.mxu0 0.0
  %973 = vmatpush1.msra.mxu0 0.0
  %974 = vmatprep.subr.mxu0 0.0
  %975 = vmatpush1.msra.mxu0 0.0
  %976 = vmatprep.subr.mxu0 0.0
  %977 = vmatpush1.msra.mxu0 0.0
  %978 = vmatprep.subr.mxu0 0.0
  %979 = vmatpush1.msra.mxu0 0.0
  %980 = vmatprep.subr.mxu0 0.0
  %981 = vmatpush1.msra.mxu0 0.0
  %982 = vmatprep.subr.mxu0 0.0
  %983 = vmatpush1.msra.mxu0 0.0
  %984 = vmatprep.subr.mxu0 0.0
  %985 = vmatpush1.msra.mxu0 0.0
  %986 = vmatprep.subr.mxu0 0.0
  %987 = vmatpush1.msra.mxu0 0.0
  %988 = vmatprep.subr.mxu0 0.0
  %989 = vmatpush1.msra.mxu0 0.0
  %990 = vmatprep.subr.mxu0 0.0
  %991 = vmatpush1.msra.mxu0 0.0
  %992 = vmatprep.subr.mxu0 0.0
  %993 = vmatpush1.msra.mxu0 0.0
  %994 = vmatprep.subr.mxu0 0.0
  %995 = vmatpush1.msra.mxu0 0.0
  %996 = vmatprep.subr.mxu0 0.0
  %997 = vmatpush1.msra.mxu0 0.0
  %998 = vmatprep.subr.mxu0 0.0
  %999 = vmatpush1.msra.mxu0 0.0
  %1000 = vmatprep.subr.mxu0 0.0
  %1001 = vmatpush1.msra.mxu0 0.0
  %1002 = vmatprep.subr.mxu0 0.0
  %1003 = vmatpush1.msra.mxu0 0.0
  %1004 = vmatprep.subr.mxu0 0.0
  %1005 = vmatpush1.msra.mxu0 0.0
  %1006 = vmatprep.subr.mxu0 0.0
  %1007 = vmatpush1.msra.mxu0 0.0
  %1008 = vmatprep.subr.mxu0 0.0
  %1009 = vmatpush1.msra.mxu0 0.0
  %1010 = vmatprep.subr.mxu0 0.0
  %1011 = vmatpush1.msra.mxu0 0.0
  %1012 = vmatprep.subr.mxu0 0.0
  %1013 = vmatpush1.msra.mxu0 0.0
  %1014 = vmatprep.subr.mxu0 0.0
  %1015 = vmatpush1.msra.mxu0 0.0
  %1016 = vmatprep.subr.mxu0 0.0
  %1017 = vmatpush1.msra.mxu0 0.0
  %1018 = vmatprep.subr.mxu0 0.0
  %1019 = vmatpush1.msra.mxu0 0.0
  %1020 = vmatprep.subr.mxu0 0.0
  %1021 = vmatpush1.msra.mxu0 0.0
  %1022 = vmatprep.subr.mxu0 0.0
  %1023 = vmatpush1.msra.mxu0 0.0
  %1024 = vmatprep.subr.mxu0 0.0
  %1025 = vmatpush1.msra.mxu0 0.0
  %1026 = vmatprep.subr.mxu0 0.0
  %1027 = vmatpush1.msra.mxu0 0.0
  %1028 = vmatprep.subr.mxu0 0.0
  %1029 = vmatpush1.msra.mxu0 0.0
  %1030 = vmatprep.subr.mxu0 0.0
  %1031 = vmatpush1.msra.mxu0 0.0
  %1032 = vmatprep.subr.mxu0 0.0
  %1033 = vmatpush1.msra.mxu0 0.0
  %1034 = vmatprep.mubr.f32.mxu0 0.0
  %1035 = vmatmul.mubr.f32.gmra.mrb[0].mxu0 %v968
  %v1036 = vpop.f32.mrb[0].mxu0
  %v1037 = vadd.f32 %v963, %v1036
  %v1038 = vpop.f32.mrb[0].mxu0
  %v1039 = vadd.f32 %v965, %v1038
  %1040 = vdwg.mxu0
  %1041 = vrot.lane.b32.xlu0 %v877, 114
  %v1042 = vpop.permute.xlu0 %1041
  %1043 = vrot.lane.b32.xlu0 %v878, 114
  %v1044 = vpop.permute.xlu0 %1043
  %v1045 = vsel %vm287, %v1042, %v1044
  %v1049 = vsel %vm134, %v881, 0
  %1051 = vmatprep.subr.mxu0 %v1044
  %1052 = vmatpush1.msra.mxu0 %v1045
  %1053 = vmatprep.subr.mxu0 0.0
  %1054 = vmatpush1.msra.mxu0 0.0
  %1055 = vmatprep.subr.mxu0 0.0
  %1056 = vmatpush1.msra.mxu0 0.0
  %1057 = vmatprep.subr.mxu0 0.0
  %1058 = vmatpush1.msra.mxu0 0.0
  %1059 = vmatprep.subr.mxu0 0.0
  %1060 = vmatpush1.msra.mxu0 0.0
  %1061 = vmatprep.subr.mxu0 0.0
  %1062 = vmatpush1.msra.mxu0 0.0
  %1063 = vmatprep.subr.mxu0 0.0
  %1064 = vmatpush1.msra.mxu0 0.0
  %1065 = vmatprep.subr.mxu0 0.0
  %1066 = vmatpush1.msra.mxu0 0.0
  %1067 = vmatprep.subr.mxu0 0.0
  %1068 = vmatpush1.msra.mxu0 0.0
  %1069 = vmatprep.subr.mxu0 0.0
  %1070 = vmatpush1.msra.mxu0 0.0
  %1071 = vmatprep.subr.mxu0 0.0
  %1072 = vmatpush1.msra.mxu0 0.0
  %1073 = vmatprep.subr.mxu0 0.0
  %1074 = vmatpush1.msra.mxu0 0.0
  %1075 = vmatprep.subr.mxu0 0.0
  %1076 = vmatpush1.msra.mxu0 0.0
  %1077 = vmatprep.subr.mxu0 0.0
  %1078 = vmatpush1.msra.mxu0 0.0
  %1079 = vmatprep.subr.mxu0 0.0
  %1080 = vmatpush1.msra.mxu0 0.0
  %1081 = vmatprep.subr.mxu0 0.0
  %1082 = vmatpush1.msra.mxu0 0.0
  %1083 = vmatprep.subr.mxu0 0.0
  %1084 = vmatpush1.msra.mxu0 0.0
  %1085 = vmatprep.subr.mxu0 0.0
  %1086 = vmatpush1.msra.mxu0 0.0
  %1087 = vmatprep.subr.mxu0 0.0
  %1088 = vmatpush1.msra.mxu0 0.0
  %1089 = vmatprep.subr.mxu0 0.0
  %1090 = vmatpush1.msra.mxu0 0.0
  %1091 = vmatprep.subr.mxu0 0.0
  %1092 = vmatpush1.msra.mxu0 0.0
  %1093 = vmatprep.subr.mxu0 0.0
  %1094 = vmatpush1.msra.mxu0 0.0
  %1095 = vmatprep.subr.mxu0 0.0
  %1096 = vmatpush1.msra.mxu0 0.0
  %1097 = vmatprep.subr.mxu0 0.0
  %1098 = vmatpush1.msra.mxu0 0.0
  %1099 = vmatprep.subr.mxu0 0.0
  %1100 = vmatpush1.msra.mxu0 0.0
  %1101 = vmatprep.subr.mxu0 0.0
  %1102 = vmatpush1.msra.mxu0 0.0
  %1103 = vmatprep.subr.mxu0 0.0
  %1104 = vmatpush1.msra.mxu0 0.0
  %1105 = vmatprep.subr.mxu0 0.0
  %1106 = vmatpush1.msra.mxu0 0.0
  %1107 = vmatprep.subr.mxu0 0.0
  %1108 = vmatpush1.msra.mxu0 0.0
  %1109 = vmatprep.subr.mxu0 0.0
  %1110 = vmatpush1.msra.mxu0 0.0
  %1111 = vmatprep.subr.mxu0 0.0
  %1112 = vmatpush1.msra.mxu0 0.0
  %1113 = vmatprep.subr.mxu0 0.0
  %1114 = vmatpush1.msra.mxu0 0.0
  %1115 = vmatprep.mubr.f32.mxu0 0.0
  %1116 = vmatmul.mubr.f32.gmra.mrb[0].mxu0 %v1049
  %v1117 = vpop.f32.mrb[0].mxu0
  %v1118 = vadd.f32 0.0, %v1117
  %v1119 = vpop.f32.mrb[0].mxu0
  %v1120 = vadd.f32 0.0, %v1119
  %1121 = vdwg.mxu0
  %v1122 = vadd.f32 %v1037, %v1118
  %v1123 = vadd.f32 %v1039, %v1120
  %1124 = vrot.lane.b32.xlu0 %v877, 107
  %v1125 = vpop.permute.xlu0 %1124
  %1126 = vrot.lane.b32.xlu0 %v878, 107
  %v1127 = vpop.permute.xlu0 %1126
  %vm1128 = vcmask 875520
  %v1129 = vsel %vm1128, %v1125, %v1127
  %v1133 = vsel %vm134, %v882, 0
  %1135 = vmatprep.subr.mxu0 %v1127
  %1136 = vmatpush1.msra.mxu0 %v1129
  %1137 = vmatprep.subr.mxu0 0.0
  %1138 = vmatpush1.msra.mxu0 0.0
  %1139 = vmatprep.subr.mxu0 0.0
  %1140 = vmatpush1.msra.mxu0 0.0
  %1141 = vmatprep.subr.mxu0 0.0
  %1142 = vmatpush1.msra.mxu0 0.0
  %1143 = vmatprep.subr.mxu0 0.0
  %1144 = vmatpush1.msra.mxu0 0.0
  %1145 = vmatprep.subr.mxu0 0.0
  %1146 = vmatpush1.msra.mxu0 0.0
  %1147 = vmatprep.subr.mxu0 0.0
  %1148 = vmatpush1.msra.mxu0 0.0
  %1149 = vmatprep.subr.mxu0 0.0
  %1150 = vmatpush1.msra.mxu0 0.0
  %1151 = vmatprep.subr.mxu0 0.0
  %1152 = vmatpush1.msra.mxu0 0.0
  %1153 = vmatprep.subr.mxu0 0.0
  %1154 = vmatpush1.msra.mxu0 0.0
  %1155 = vmatprep.subr.mxu0 0.0
  %1156 = vmatpush1.msra.mxu0 0.0
  %1157 = vmatprep.subr.mxu0 0.0
  %1158 = vmatpush1.msra.mxu0 0.0
  %1159 = vmatprep.subr.mxu0 0.0
  %1160 = vmatpush1.msra.mxu0 0.0
  %1161 = vmatprep.subr.mxu0 0.0
  %1162 = vmatpush1.msra.mxu0 0.0
  %1163 = vmatprep.subr.mxu0 0.0
  %1164 = vmatpush1.msra.mxu0 0.0
  %1165 = vmatprep.subr.mxu0 0.0
  %1166 = vmatpush1.msra.mxu0 0.0
  %1167 = vmatprep.subr.mxu0 0.0
  %1168 = vmatpush1.msra.mxu0 0.0
  %1169 = vmatprep.subr.mxu0 0.0
  %1170 = vmatpush1.msra.mxu0 0.0
  %1171 = vmatprep.subr.mxu0 0.0
  %1172 = vmatpush1.msra.mxu0 0.0
  %1173 = vmatprep.subr.mxu0 0.0
  %1174 = vmatpush1.msra.mxu0 0.0
  %1175 = vmatprep.subr.mxu0 0.0
  %1176 = vmatpush1.msra.mxu0 0.0
  %1177 = vmatprep.subr.mxu0 0.0
  %1178 = vmatpush1.msra.mxu0 0.0
  %1179 = vmatprep.subr.mxu0 0.0
  %1180 = vmatpush1.msra.mxu0 0.0
  %1181 = vmatprep.subr.mxu0 0.0
  %1182 = vmatpush1.msra.mxu0 0.0
  %1183 = vmatprep.subr.mxu0 0.0
  %1184 = vmatpush1.msra.mxu0 0.0
  %1185 = vmatprep.subr.mxu0 0.0
  %1186 = vmatpush1.msra.mxu0 0.0
  %1187 = vmatprep.subr.mxu0 0.0
  %1188 = vmatpush1.msra.mxu0 0.0
  %1189 = vmatprep.subr.mxu0 0.0
  %1190 = vmatpush1.msra.mxu0 0.0
  %1191 = vmatprep.subr.mxu0 0.0
  %1192 = vmatpush1.msra.mxu0 0.0
  %1193 = vmatprep.subr.mxu0 0.0
  %1194 = vmatpush1.msra.mxu0 0.0
  %1195 = vmatprep.subr.mxu0 0.0
  %1196 = vmatpush1.msra.mxu0 0.0
  %1197 = vmatprep.subr.mxu0 0.0
  %1198 = vmatpush1.msra.mxu0 0.0
  %1199 = vmatprep.mubr.f32.mxu0 0.0
  %1200 = vmatmul.mubr.f32.gmra.mrb[0].mxu0 %v1133
  %v1201 = vpop.f32.mrb[0].mxu0
  %v1202 = vadd.f32 0.0, %v1201
  %v1203 = vpop.f32.mrb[0].mxu0
  %v1204 = vadd.f32 0.0, %v1203
  %1205 = vdwg.mxu0
  %v1206 = vadd.f32 %v1122, %v1202
  %v1207 = vadd.f32 %v1123, %v1204
  %1208 = vrot.lane.b32.xlu0 %v877, 100
  %v1209 = vpop.permute.xlu0 %1208
  %1210 = vrot.lane.b32.xlu0 %v878, 100
  %v1211 = vpop.permute.xlu0 %1210
  %vm1212 = vcmask 818176
  %v1213 = vsel %vm1212, %v1209, %v1211
  %v1217 = vsel %vm134, %v883, 0
  %1219 = vmatprep.subr.mxu0 %v1211
  %1220 = vmatpush1.msra.mxu0 %v1213
  %1221 = vmatprep.subr.mxu0 0.0
  %1222 = vmatpush1.msra.mxu0 0.0
  %1223 = vmatprep.subr.mxu0 0.0
  %1224 = vmatpush1.msra.mxu0 0.0
  %1225 = vmatprep.subr.mxu0 0.0
  %1226 = vmatpush1.msra.mxu0 0.0
  %1227 = vmatprep.subr.mxu0 0.0
  %1228 = vmatpush1.msra.mxu0 0.0
  %1229 = vmatprep.subr.mxu0 0.0
  %1230 = vmatpush1.msra.mxu0 0.0
  %1231 = vmatprep.subr.mxu0 0.0
  %1232 = vmatpush1.msra.mxu0 0.0
  %1233 = vmatprep.subr.mxu0 0.0
  %1234 = vmatpush1.msra.mxu0 0.0
  %1235 = vmatprep.subr.mxu0 0.0
  %1236 = vmatpush1.msra.mxu0 0.0
  %1237 = vmatprep.subr.mxu0 0.0
  %1238 = vmatpush1.msra.mxu0 0.0
  %1239 = vmatprep.subr.mxu0 0.0
  %1240 = vmatpush1.msra.mxu0 0.0
  %1241 = vmatprep.subr.mxu0 0.0
  %1242 = vmatpush1.msra.mxu0 0.0
  %1243 = vmatprep.subr.mxu0 0.0
  %1244 = vmatpush1.msra.mxu0 0.0
  %1245 = vmatprep.subr.mxu0 0.0
  %1246 = vmatpush1.msra.mxu0 0.0
  %1247 = vmatprep.subr.mxu0 0.0
  %1248 = vmatpush1.msra.mxu0 0.0
  %1249 = vmatprep.subr.mxu0 0.0
  %1250 = vmatpush1.msra.mxu0 0.0
  %1251 = vmatprep.subr.mxu0 0.0
  %1252 = vmatpush1.msra.mxu0 0.0
  %1253 = vmatprep.subr.mxu0 0.0
  %1254 = vmatpush1.msra.mxu0 0.0
  %1255 = vmatprep.subr.mxu0 0.0
  %1256 = vmatpush1.msra.mxu0 0.0
  %1257 = vmatprep.subr.mxu0 0.0
  %1258 = vmatpush1.msra.mxu0 0.0
  %1259 = vmatprep.subr.mxu0 0.0
  %1260 = vmatpush1.msra.mxu0 0.0
  %1261 = vmatprep.subr.mxu0 0.0
  %1262 = vmatpush1.msra.mxu0 0.0
  %1263 = vmatprep.subr.mxu0 0.0
  %1264 = vmatpush1.msra.mxu0 0.0
  %1265 = vmatprep.subr.mxu0 0.0
  %1266 = vmatpush1.msra.mxu0 0.0
  %1267 = vmatprep.subr.mxu0 0.0
  %1268 = vmatpush1.msra.mxu0 0.0
  %1269 = vmatprep.subr.mxu0 0.0
  %1270 = vmatpush1.msra.mxu0 0.0
  %1271 = vmatprep.subr.mxu0 0.0
  %1272 = vmatpush1.msra.mxu0 0.0
  %1273 = vmatprep.subr.mxu0 0.0
  %1274 = vmatpush1.msra.mxu0 0.0
  %1275 = vmatprep.subr.mxu0 0.0
  %1276 = vmatpush1.msra.mxu0 0.0
  %1277 = vmatprep.subr.mxu0 0.0
  %1278 = vmatpush1.msra.mxu0 0.0
  %1279 = vmatprep.subr.mxu0 0.0
  %1280 = vmatpush1.msra.mxu0 0.0
  %1281 = vmatprep.subr.mxu0 0.0
  %1282 = vmatpush1.msra.mxu0 0.0
  %1283 = vmatprep.mubr.f32.mxu0 0.0
  %1284 = vmatmul.mubr.f32.gmra.mrb[0].mxu0 %v1217
  %v1285 = vpop.f32.mrb[0].mxu0
  %v1286 = vadd.f32 0.0, %v1285
  %v1287 = vpop.f32.mrb[0].mxu0
  %v1288 = vadd.f32 0.0, %v1287
  %1289 = vdwg.mxu0
  %v1290 = vadd.f32 %v1206, %v1286
  %v1291 = vadd.f32 %v1207, %v1288
  %1292 = vset.pattern.permute.xlu0 2
  %1293 = vperm.xlu0 %1292, %v24
  %v1294 = vpop.permute.xlu0 %1293
  %v1296 = vadd.f32 %v1290, %v1294
  %v1297 = vadd.f32 %v1291, %v1294
  %1298 = vxpose.xlu0.b32.start [1/16] %v1296, 128
  %1299 = vxpose.xlu0.b32.cont [2/16] 0.0, 128
  %1300 = vxpose.xlu0.b32.cont [3/16] 0.0, 128
  %1301 = vxpose.xlu0.b32.cont [4/16] 0.0, 128
  %1302 = vxpose.xlu0.b32.cont [5/16] 0.0, 128
  %1303 = vxpose.xlu0.b32.cont [6/16] 0.0, 128
  %1304 = vxpose.xlu0.b32.cont [7/16] 0.0, 128
  %1305 = vxpose.xlu0.b32.cont [8/16] 0.0, 128
  %1306 = vxpose.xlu0.b32.cont [9/16] 0.0, 128
  %1307 = vxpose.xlu0.b32.cont [10/16] 0.0, 128
  %1308 = vxpose.xlu0.b32.cont [11/16] 0.0, 128
  %1309 = vxpose.xlu0.b32.cont [12/16] 0.0, 128
  %1310 = vxpose.xlu0.b32.cont [13/16] 0.0, 128
  %1311 = vxpose.xlu0.b32.cont [14/16] 0.0, 128
  %1312 = vxpose.xlu0.b32.cont [15/16] 0.0, 128
  %1313 = vxpose.xlu0.b32.end [16/16] 0.0, 128
  %v1314 = vpop.trf.xlu0
  %v1315 = vpop.trf.xlu0
  %v1316 = vpop.trf.xlu0
  %v1317 = vpop.trf.xlu0
  %v1318 = vpop.trf.xlu0
  %v1319 = vpop.trf.xlu0
  %v1320 = vpop.trf.xlu0
  %v1321 = vpop.trf.xlu0
  %v1322 = vpop.trf.xlu0
  %v1323 = vpop.trf.xlu0
  %v1324 = vpop.trf.xlu0
  %v1325 = vpop.trf.xlu0
  %v1326 = vpop.trf.xlu0
  %v1327 = vpop.trf.xlu0
  %v1328 = vpop.trf.xlu0
  %v1329 = vpop.trf.xlu0
  %vm1330 = vcmask 61440
  %1331 = vst.msk [vmem:[%s5] sm:$0x1f] %vm1330, %v1314
  %1332 = vxpose.xlu0.b32.start [1/16] %v1297, 128
  %1333 = vxpose.xlu0.b32.cont [2/16] 0.0, 128
  %1334 = vxpose.xlu0.b32.cont [3/16] 0.0, 128
  %1335 = vxpose.xlu0.b32.cont [4/16] 0.0, 128
  %1336 = vxpose.xlu0.b32.cont [5/16] 0.0, 128
  %1337 = vxpose.xlu0.b32.cont [6/16] 0.0, 128
  %1338 = vxpose.xlu0.b32.cont [7/16] 0.0, 128
  %1339 = vxpose.xlu0.b32.cont [8/16] 0.0, 128
  %1340 = vxpose.xlu0.b32.cont [9/16] 0.0, 128
  %1341 = vxpose.xlu0.b32.cont [10/16] 0.0, 128
  %1342 = vxpose.xlu0.b32.cont [11/16] 0.0, 128
  %1343 = vxpose.xlu0.b32.cont [12/16] 0.0, 128
  %1344 = vxpose.xlu0.b32.cont [13/16] 0.0, 128
  %1345 = vxpose.xlu0.b32.cont [14/16] 0.0, 128
  %1346 = vxpose.xlu0.b32.cont [15/16] 0.0, 128
  %1347 = vxpose.xlu0.b32.end [16/16] 0.0, 128
  %v1348 = vpop.trf.xlu0
  %v1349 = vpop.trf.xlu0
  %v1350 = vpop.trf.xlu0
  %v1351 = vpop.trf.xlu0
  %v1352 = vpop.trf.xlu0
  %v1353 = vpop.trf.xlu0
  %v1354 = vpop.trf.xlu0
  %v1355 = vpop.trf.xlu0
  %v1356 = vpop.trf.xlu0
  %v1357 = vpop.trf.xlu0
  %v1358 = vpop.trf.xlu0
  %v1359 = vpop.trf.xlu0
  %v1360 = vpop.trf.xlu0
  %v1361 = vpop.trf.xlu0
  %v1362 = vpop.trf.xlu0
  %v1363 = vpop.trf.xlu0
  %s1364 = scalar_lea.vmem %s5, 8
  %1365 = vst.msk [vmem:[%s1364] sm:$0x1f] %vm1330, %v1348
  // Predicated region
  $region22: #{tpu_custom_call.1} parent=0 // pred_check
    _
  $region23: #{tpu_custom_call.1} parent=0 // pred_check_branch
    %1367 = sbr.rel (0) target = $region25
  $region24: #{tpu_custom_call.1} parent=0 // pred_region
    _
  $region25: #{tpu_custom_call.1} parent=0 // pred_fallthru
    _
  // Predicated region
  $region26: #{tpu_custom_call.1} parent=0 // pred_check
    _
  $region27: #{tpu_custom_call.1} parent=0 // pred_check_branch
    %1369 = sbr.rel (0) target = $region29
  $region28: #{tpu_custom_call.1} parent=0 // pred_region
    _
  $region29: #{tpu_custom_call.1} parent=0 // pred_fallthru
    _

</llo_original>
